<compile_context>
chip_gen: v7x
topology: tpu7x:2x2x1
jax: 0.10.0
libtpu: 0.0.40
codegen_flags: <defaults>
</compile_context>

<pallas_src>
import functools

import jax
import jax.numpy as jnp
from jax.experimental import pallas as pl
from jax.experimental.pallas import tpu as pltpu


# --------------------------------------------------------------------------- #
# Kernel
# --------------------------------------------------------------------------- #
def _mha_kernel(x_ref, ctx_ref, mask_ref,
                wq_ref, bq_ref, wk_ref, wv_ref, wo_ref, bo_ref,
                o_ref,
                q_scr, k_scr, v_scr, attn_scr,
                *, batch_tile, q_len, kv_len, num_heads, head_dim):
    """Fused MHA forward for one batch tile.

    x_ref:    (Bt*Tq, E) f32 (cast to the MXU dtype in-kernel)
    ctx_ref:  (Bt*Tk, E) f32
    mask_ref: (B, Tk)    f32 full mask (1.0 = keep; else score filled with 1e-10)
    wq/wk/wv/wo: (E, E)  compute dtype (wq pre-scaled by head_dim**-0.5)
    bq/bo:    (1, E)     f32 (bq pre-scaled)
    o_ref:    (Bt*Tq, E) output dtype
    q_scr/attn_scr: (Bt*Tq, E) compute dtype VMEM scratch
    k_scr/v_scr:    (Bt*Tk, E) compute dtype VMEM scratch
    """
    Bt, Tq, Tk, H, D = batch_tile, q_len, kv_len, num_heads, head_dim
    cdt = q_scr.dtype  # MXU input dtype; accumulation is always f32.

    # Cast to the compute dtype only after the f32 block is already in VMEM.
    xw = x_ref[...].astype(cdt)          # (Bt*Tq, E)
    cw = ctx_ref[...].astype(cdt)        # (Bt*Tk, E)

    # ---- Batched projections: one big lane-aligned MXU matmul each ---------
    q = jnp.dot(xw, wq_ref[...], preferred_element_type=jnp.float32) + bq_ref[...]
    k = jnp.dot(cw, wk_ref[...], preferred_element_type=jnp.float32)   # add_bias_kv=False
    v = jnp.dot(cw, wv_ref[...], preferred_element_type=jnp.float32)   # add_bias_kv=False

    # Park projections in VMEM scratch: bounds live ranges across the batch loop.
    q_scr[...] = q.astype(cdt)
    k_scr[...] = k.astype(cdt)
    v_scr[...] = v.astype(cdt)

    tile0 = pl.program_id(0) * Bt        # first global batch row of this tile

    # ---- Attention core: fori_loop over batch elements, static head loop ---
    # TODO(synk): for long sequences, tile Tk as an "arbitrary" grid axis with an
    # online-softmax (flash) accumulator instead of materializing (Tq, Tk).
    def batch_body(b, carry):
        qoff = pl.multiple_of(b * Tq, Tq)
        koff = pl.multiple_of(b * Tk, Tk)

        # torch: masked_fill where (1 - mask) is truthy -> fill with 1e-10.
        mrow = mask_ref[pl.ds(tile0 + b, 1), :]                  # (1, Tk) f32
        rev = jnp.broadcast_to(1.0 - mrow, (Tq, Tk))             # hoisted once
        fill = rev != 0.0                                        # (Tq, Tk) bool

        for h in range(H):                                       # short static loop
            qh = q_scr[pl.ds(qoff, Tq), pl.ds(h * D, D)]         # (Tq, D)
            kh = k_scr[pl.ds(koff, Tk), pl.ds(h * D, D)]         # (Tk, D)
            vh = v_scr[pl.ds(koff, Tk), pl.ds(h * D, D)]         # (Tk, D)

            # scores = (q * scaling) @ k^T  (scaling already folded into wq/bq).
            s = jax.lax.dot_general(
                qh, kh, (((1,), (1,)), ((), ())),
                preferred_element_type=jnp.float32)              # (Tq, Tk) f32
            s = jnp.where(fill, jnp.float32(1e-10), s)

            # Softmax over keys in f32; reciprocal on the EUP (approx) slot.
            m = jnp.max(s, axis=-1, keepdims=True)
            e = jnp.exp(s - m)
            p = e * pl.reciprocal(jnp.sum(e, axis=-1, keepdims=True), approx=True)

            # P @ V (bf16 MXU, f32 acc) -> straight into the merged scratch slab.
            o_bh = jnp.dot(p.astype(cdt), vh, preferred_element_type=jnp.float32)
            attn_scr[pl.ds(qoff, Tq), pl.ds(h * D, D)] = o_bh.astype(cdt)
        return carry

    jax.lax.fori_loop(0, Bt, batch_body, 0)

    # ---- Output projection (Dropout(p=0.0) in eval mode is the identity) ---
    y = jnp.dot(attn_scr[...], wo_ref[...],
                preferred_element_type=jnp.float32) + bo_ref[...]
    o_ref[...] = y.astype(o_ref.dtype)


# --------------------------------------------------------------------------- #
# Wrapper helpers
# --------------------------------------------------------------------------- #
def prepare_params(params, num_heads, compute_dtype=jnp.bfloat16):
    """Fold the 1/sqrt(head_dim) scaling into Wq/bq and cast weights to the MXU
    compute dtype. Biases stay f32 (added after f32 accumulation)."""
    E = params["wq"].shape[0]
    scaling = float(E // num_heads) ** (-0.5)
    return {
        "wq": (params["wq"] * scaling).astype(compute_dtype),
        "bq": (params["bq"] * scaling).astype(jnp.float32),
        "wk": params["wk"].astype(compute_dtype),
        "wv": params["wv"].astype(compute_dtype),
        "wo": params["wo"].astype(compute_dtype),
        "bo": params["bo"].astype(jnp.float32),
    }


def _vmem_capacity_bytes():
    """Physical VMEM of the local TPU; conservative 64 MiB (v7x) fallback."""
    try:
        cap = getattr(pltpu.get_tpu_info(), "vmem_capacity_bytes", None)
        if cap:
            return int(cap)
    except Exception:
        pass
    return 64 << 20


def _working_set_bytes(bt, B, Tq, Tk, E, csize, osize):
    """Approximate per-grid-step VMEM working set for a batch tile of size bt."""
    weights = 2 * (4 * E * E * csize) + 2 * E * 4      # dbl-buffered weights + f32 biases
    mask = B * Tk * 4                                   # full mask resident
    io = 2 * (bt * Tq * E * 4 + bt * Tk * E * 4         # f32 activation blocks (dbl-buf)
              + bt * Tq * E * osize)                     # output block (dbl-buf)
    scratch = (2 * bt * Tq * E + 2 * bt * Tk * E) * csize   # q/attn + k/v scratch
    inter = ((bt * Tq + 2 * bt * Tk) * E * 4             # f32 projection results
             + bt * Tq * E * 4                           # output-projection result
             + 8 * Tq * Tk * 4)                          # live (Tq,Tk) score temporaries
    return weights + mask + io + scratch + inter


def _pick_batch_tile(B, Tq, Tk, E, csize, osize, vmem_cap):
    """Largest blockable batch tile within ~1/4 of VMEM, preferring >= 2 grid
    steps (megacore sharding on v7x + DMA/compute overlap)."""
    budget = vmem_cap // 4

    def valid(bt):
        if B % bt:
            return False
        if bt == B:
            return True
        # Blockability: second-to-last block dims must be multiples of 8 unless
        # the block spans the whole array.
        return (bt * Tq) % 8 == 0 and (bt * Tk) % 8 == 0

    cands = sorted(bt for bt in range(1, B + 1) if valid(bt))
    if not cands:
        return B
    multi = [bt for bt in cands if B // bt >= 2]
    pool = multi if multi else cands
    best = pool[0]
    for bt in pool:
        if _working_set_bytes(bt, B, Tq, Tk, E, csize, osize) <= budget:
            best = max(best, bt)
    return best


# --------------------------------------------------------------------------- #
# Wrapper
# --------------------------------------------------------------------------- #
def multi_heads_attention(x, params, *, num_heads, context=None, attn_mask=None,
                          compute_dtype=jnp.bfloat16, out_dtype=jnp.float32):
    """Pallas implementation of MultiHeadsAttention.forward.

    x:        (B, Tq, E) float32 (or bf16)
    context:  (B, Tk, E) or None (defaults to x)
    attn_mask:(B, Tk) float (1 = keep, otherwise score filled with 1e-10) or None
    params:   dict with wq, bq, wk, wv, wo, bo (weights stored [in, out])
    """
    if context is None:
        context = x
    B, Tq, E = x.shape
    Tk = context.shape[1]
    assert E % num_heads == 0
    D = E // num_heads
    # TODO(synk): for production shapes, pad E (and Tk) to multiples of 128 for
    # lane-dense stores; the self-test shapes rely on full-dim blocks instead.

    prep = prepare_params(params, num_heads, compute_dtype)

    if attn_mask is None:
        mask = jnp.ones((B, Tk), dtype=jnp.float32)   # all-ones == no masking
    else:
        mask = attn_mask.astype(jnp.float32)

    csize = jnp.dtype(compute_dtype).itemsize
    osize = jnp.dtype(out_dtype).itemsize
    vmem_cap = _vmem_capacity_bytes()
    Bt = _pick_batch_tile(B, Tq, Tk, E, csize, osize, vmem_cap)
    n_tiles = B // Bt

    # NO dtype cast here — the kernel casts after the block is already in VMEM.
    x_flat = x.reshape(B * Tq, E)
    ctx_flat = context.reshape(B * Tk, E)

    kernel = functools.partial(
        _mha_kernel, batch_tile=Bt, q_len=Tq, kv_len=Tk,
        num_heads=num_heads, head_dim=D)

    def w_spec():
        return pl.BlockSpec((E, E), lambda i: (0, 0))

    def b_spec():
        return pl.BlockSpec((1, E), lambda i: (0, 0))

    grid_spec = pltpu.PrefetchScalarGridSpec(
        num_scalar_prefetch=0,
        grid=(n_tiles,),
        in_specs=[
            pl.BlockSpec((Bt * Tq, E), lambda i: (i, 0)),   # x   (flattened rows, f32)
            pl.BlockSpec((Bt * Tk, E), lambda i: (i, 0)),   # ctx (flattened rows, f32)
            pl.BlockSpec((B, Tk), lambda i: (0, 0)),        # full mask (tiny, index fixed)
            w_spec(), b_spec(),                             # wq, bq
            w_spec(), w_spec(),                             # wk, wv
            w_spec(), b_spec(),                             # wo, bo
        ],
        out_specs=pl.BlockSpec((Bt * Tq, E), lambda i: (i, 0)),
        scratch_shapes=[
            pltpu.VMEM((Bt * Tq, E), compute_dtype),        # q_scr
            pltpu.VMEM((Bt * Tk, E), compute_dtype),        # k_scr
            pltpu.VMEM((Bt * Tk, E), compute_dtype),        # v_scr
            pltpu.VMEM((Bt * Tq, E), compute_dtype),        # attn_scr (merged heads)
        ],
    )

    # Explicit VMEM budget: 2x the estimated working set, capped at 75% of the
    # physical VMEM (leaves headroom for compiler internals — matters on v7x).
    ws = _working_set_bytes(Bt, B, Tq, Tk, E, csize, osize)
    vmem_limit = int(min(max(2 * ws, 16 << 20), int(0.75 * vmem_cap)))

    # Advisory cost estimate so XLA schedules surrounding ops around the call.
    flops = (2 * B * Tq * E * E            # Q projection
             + 2 * 2 * B * Tk * E * E      # K, V projections
             + 2 * B * Tq * E * E          # output projection
             + 4 * B * num_heads * Tq * Tk * D)   # QK^T + PV
    bytes_accessed = (B * Tq * E * 4 + B * Tk * E * 4 + B * Tk * 4
                      + 4 * E * E * csize + 2 * E * 4
                      + B * Tq * E * osize)
    cost = pl.CostEstimate(flops=int(flops),
                           transcendentals=int(B * num_heads * Tq * Tk),
                           bytes_accessed=int(bytes_accessed))

    out_flat = pl.pallas_call(
        kernel,
        out_shape=jax.ShapeDtypeStruct((B * Tq, E), out_dtype),
        grid_spec=grid_spec,
        compiler_params=pltpu.CompilerParams(
            dimension_semantics=("parallel",),
            vmem_limit_bytes=vmem_limit),
        cost_estimate=cost,
    )(x_flat, ctx_flat, mask,
      prep["wq"], prep["bq"], prep["wk"], prep["wv"], prep["wo"], prep["bo"])

    return out_flat.reshape(B, Tq, E)


# --------------------------------------------------------------------------- #
# References (for self-checking)
# --------------------------------------------------------------------------- #
def _reference_mha_f32(x, params, *, num_heads, context=None, attn_mask=None):
    """Pure-JAX f32 reference mirroring the PyTorch module exactly."""
    if context is None:
        context = x
    B, Tq, E = x.shape
    Tk = context.shape[1]
    D = E // num_heads
    scaling = D ** (-0.5)
    q = x @ params["wq"] + params["bq"]
    k = context @ params["wk"]
    v = context @ params["wv"]
    q = q.reshape(B, Tq, num_heads, D).transpose(0, 2, 1, 3)
    k = k.reshape(B, Tk, num_heads, D).transpose(0, 2, 1, 3)
    v = v.reshape(B, Tk, num_heads, D).transpose(0, 2, 1, 3)
    s = jnp.einsum('bhij,bhkj->bhik', q, k) * scaling
    if attn_mask is not None:
        rev = 1.0 - attn_mask[:, None, None, :]
        s = jnp.where(rev != 0.0, 1e-10, s)
    p = jax.nn.softmax(s, axis=-1)
    o = jnp.einsum('bhik,bhkj->bhij', p, v)
    o = o.transpose(0, 2, 1, 3).reshape(B, Tq, E)
    return o @ params["wo"] + params["bo"]


def _mirror_reference(x, context, attn_mask, prep, *, num_heads):
    """Pure-JAX reference mirroring the kernel's bf16/f32 cast points."""
    cdt = prep["wq"].dtype
    B, Tq, E = x.shape
    Tk = context.shape[1]
    H = num_heads
    D = E // H
    mask = (jnp.ones((B, Tk), jnp.float32) if attn_mask is None
            else attn_mask.astype(jnp.float32))
    xf = x.astype(cdt).reshape(B * Tq, E)
    cf = context.astype(cdt).reshape(B * Tk, E)
    q = jnp.dot(xf, prep["wq"], preferred_element_type=jnp.float32) + prep["bq"]
    k = jnp.dot(cf, prep["wk"], preferred_element_type=jnp.float32)
    v = jnp.dot(cf, prep["wv"], preferred_element_type=jnp.float32)
    qc, kc, vc = q.astype(cdt), k.astype(cdt), v.astype(cdt)
    outs = []
    for b in range(B):
        qb = qc[b * Tq:(b + 1) * Tq]
        kb = kc[b * Tk:(b + 1) * Tk]
        vb = vc[b * Tk:(b + 1) * Tk]
        fill = (1.0 - mask[b])[None, :] != 0.0
        heads = []
        for h in range(H):
            qh = qb[:, h * D:(h + 1) * D]
            kh = kb[:, h * D:(h + 1) * D]
            vh = vb[:, h * D:(h + 1) * D]
            s = jax.lax.dot_general(qh, kh, (((1,), (1,)), ((), ())),
                                    preferred_element_type=jnp.float32)
            s = jnp.where(fill, jnp.float32(1e-10), s)
            m = jnp.max(s, axis=-1, keepdims=True)
            e = jnp.exp(s - m)
            p = e / jnp.sum(e, axis=-1, keepdims=True)
            heads.append(jnp.dot(p.astype(cdt), vh,
                                 preferred_element_type=jnp.float32))
        outs.append(jnp.concatenate(heads, axis=-1))
    attn = jnp.concatenate(outs, axis=0)
    y = jnp.dot(attn.astype(cdt), prep["wo"],
                preferred_element_type=jnp.float32) + prep["bo"]
    return y.reshape(B, Tq, E)


# --------------------------------------------------------------------------- #
# Self-test
# --------------------------------------------------------------------------- #
if __name__ == "__main__":
    # Small, forward-implied shapes: B=2, T(seq)=8, embed_dim=32, heads=4.
    B, T, E, H = 2, 8, 32, 4

    key = jax.random.PRNGKey(0)
    ks = jax.random.split(key, 8)

    # Deterministic parameter init (synthetic; mimics nn.Linear shapes).
    # Weights are stored as [in, out] (i.e. W.T relative to torch.nn.Linear).
    scale = 1.0 / jnp.sqrt(E)
    params = {
        "wq": jax.random.normal(ks[0], (E, E), jnp.float32) * scale,
        "bq": jax.random.normal(ks[1], (1, E), jnp.float32) * scale,
        "wk": jax.random.normal(ks[2], (E, E), jnp.float32) * scale,
        "wv": jax.random.normal(ks[3], (E, E), jnp.float32) * scale,
        "wo": jax.random.normal(ks[4], (E, E), jnp.float32) * scale,
        "bo": jax.random.normal(ks[5], (1, E), jnp.float32) * scale,
    }

    x = jax.random.normal(ks[6], (B, T, E), jnp.float32)
    # Example padding mask: last two key positions of batch 1 masked out.
    attn_mask = jnp.ones((B, T), jnp.float32).at[1, -2:].set(0.0)

    out = multi_heads_attention(x, params, num_heads=H, attn_mask=attn_mask)
    out = jax.block_until_ready(out)
    assert out.shape == (B, T, E)

    # Check 1: against a reference with identical bf16 cast points (tight).
    prep = prepare_params(params, H, jnp.bfloat16)
    ref_bf16 = _mirror_reference(x, x, attn_mask, prep, num_heads=H)
    assert jnp.allclose(out, ref_bf16, atol=2e-2, rtol=2e-2), \
        "mismatch vs bf16-matched reference"

    # Check 2: against the exact f32 module semantics (loose: bf16 MXU inputs).
    ref_f32 = _reference_mha_f32(x, params, num_heads=H, attn_mask=attn_mask)
    assert jnp.allclose(out, ref_f32, atol=1e-1, rtol=1e-1), \
        "mismatch vs f32 module reference"

    # TODO(synk): attn_dropout > 0 (training mode) would need pltpu.prng_* in-kernel;
    # with the module default attn_dropout=0.0 / eval mode, dropout is the identity.
    print("KERNEL_OK")
</pallas_src>

<mosaic_0001>
module attributes {stable_mosaic.version = 11 : i64} {
  func.func @_mha_kernel(%arg0: i32, %arg1: memref<8x32xf32, #tpu.memory_space<vmem>>, %arg2: memref<8x32xf32, #tpu.memory_space<vmem>>, %arg3: memref<2x8xf32, #tpu.memory_space<vmem>>, %arg4: memref<32x32xbf16, #tpu.memory_space<vmem>>, %arg5: memref<1x32xf32, #tpu.memory_space<vmem>>, %arg6: memref<32x32xbf16, #tpu.memory_space<vmem>>, %arg7: memref<32x32xbf16, #tpu.memory_space<vmem>>, %arg8: memref<32x32xbf16, #tpu.memory_space<vmem>>, %arg9: memref<1x32xf32, #tpu.memory_space<vmem>>, %arg10: memref<8x32xf32, #tpu.memory_space<vmem>>, %arg11: memref<8x32xbf16, #tpu.memory_space<vmem>>, %arg12: memref<8x32xbf16, #tpu.memory_space<vmem>>, %arg13: memref<8x32xbf16, #tpu.memory_space<vmem>>, %arg14: memref<8x32xbf16, #tpu.memory_space<vmem>>) attributes {dimension_semantics = [#tpu.dimension_semantics<parallel>], iteration_bounds = array<i64: 2>, scalar_prefetch = 0 : i64, scratch_operands = 4 : i64, tpu.core_type = #tpu.core_type<tc>, window_params = [{transform_indices = @transform_0, window_bounds = array<i64: 8, 32>}, {transform_indices = @transform_1, window_bounds = array<i64: 8, 32>}, {pipeline_mode = #tpu.pipeline_mode<synchronous>, transform_indices = @transform_2, window_bounds = array<i64: 2, 8>}, {pipeline_mode = #tpu.pipeline_mode<synchronous>, transform_indices = @transform_3, window_bounds = array<i64: 32, 32>}, {pipeline_mode = #tpu.pipeline_mode<synchronous>, transform_indices = @transform_4, window_bounds = array<i64: 1, 32>}, {pipeline_mode = #tpu.pipeline_mode<synchronous>, transform_indices = @transform_5, window_bounds = array<i64: 32, 32>}, {pipeline_mode = #tpu.pipeline_mode<synchronous>, transform_indices = @transform_6, window_bounds = array<i64: 32, 32>}, {pipeline_mode = #tpu.pipeline_mode<synchronous>, transform_indices = @transform_7, window_bounds = array<i64: 32, 32>}, {pipeline_mode = #tpu.pipeline_mode<synchronous>, transform_indices = @transform_8, window_bounds = array<i64: 1, 32>}, {transform_indices = @transform_9, window_bounds = array<i64: 8, 32>}]} {
    %c0 = arith.constant 0 : index
    %c0_0 = arith.constant 0 : index
    %0 = vector.load %arg1[%c0, %c0_0] : memref<8x32xf32, #tpu.memory_space<vmem>>, vector<8x32xf32>
    %1 = arith.truncf %0 : vector<8x32xf32> to vector<8x32xbf16>
    %c0_1 = arith.constant 0 : index
    %c0_2 = arith.constant 0 : index
    %2 = vector.load %arg2[%c0_1, %c0_2] : memref<8x32xf32, #tpu.memory_space<vmem>>, vector<8x32xf32>
    %3 = arith.truncf %2 : vector<8x32xf32> to vector<8x32xbf16>
    %c0_3 = arith.constant 0 : index
    %c0_4 = arith.constant 0 : index
    %4 = vector.load %arg4[%c0_3, %c0_4] : memref<32x32xbf16, #tpu.memory_space<vmem>>, vector<32x32xbf16>
    %cst = arith.constant dense<0.000000e+00> : vector<8x32xf32>
    %5 = tpu.matmul %1, %4, %cst {dimension_numbers = #tpu.dot_dimension_numbers<[1], [0], [0], [1], [0, 0, 1, 1], [], []>} : vector<8x32xbf16>, vector<32x32xbf16>, vector<8x32xf32> -> vector<8x32xf32>
    %c0_5 = arith.constant 0 : index
    %c0_6 = arith.constant 0 : index
    %6 = vector.load %arg5[%c0_5, %c0_6] : memref<1x32xf32, #tpu.memory_space<vmem>>, vector<1x32xf32>
    %7 = vector.broadcast %6 : vector<1x32xf32> to vector<8x32xf32>
    %8 = arith.addf %5, %7 : vector<8x32xf32>
    %c0_7 = arith.constant 0 : index
    %c0_8 = arith.constant 0 : index
    %9 = vector.load %arg6[%c0_7, %c0_8] : memref<32x32xbf16, #tpu.memory_space<vmem>>, vector<32x32xbf16>
    %cst_9 = arith.constant dense<0.000000e+00> : vector<8x32xf32>
    %10 = tpu.matmul %3, %9, %cst_9 {dimension_numbers = #tpu.dot_dimension_numbers<[1], [0], [0], [1], [0, 0, 1, 1], [], []>} : vector<8x32xbf16>, vector<32x32xbf16>, vector<8x32xf32> -> vector<8x32xf32>
    %c0_10 = arith.constant 0 : index
    %c0_11 = arith.constant 0 : index
    %11 = vector.load %arg7[%c0_10, %c0_11] : memref<32x32xbf16, #tpu.memory_space<vmem>>, vector<32x32xbf16>
    %cst_12 = arith.constant dense<0.000000e+00> : vector<8x32xf32>
    %12 = tpu.matmul %3, %11, %cst_12 {dimension_numbers = #tpu.dot_dimension_numbers<[1], [0], [0], [1], [0, 0, 1, 1], [], []>} : vector<8x32xbf16>, vector<32x32xbf16>, vector<8x32xf32> -> vector<8x32xf32>
    %13 = arith.truncf %8 : vector<8x32xf32> to vector<8x32xbf16>
    %c0_13 = arith.constant 0 : index
    %c0_14 = arith.constant 0 : index
    %14 = vector.load %arg11[%c0_13, %c0_14] : memref<8x32xbf16, #tpu.memory_space<vmem>>, vector<8x32xbf16>
    tpu.vector_store %arg11[%c0_13, %c0_14], %13 {strides = array<i32>} : memref<8x32xbf16, #tpu.memory_space<vmem>>, vector<8x32xbf16>,
    %15 = arith.truncf %10 : vector<8x32xf32> to vector<8x32xbf16>
    %c0_15 = arith.constant 0 : index
    %c0_16 = arith.constant 0 : index
    %16 = vector.load %arg12[%c0_15, %c0_16] : memref<8x32xbf16, #tpu.memory_space<vmem>>, vector<8x32xbf16>
    tpu.vector_store %arg12[%c0_15, %c0_16], %15 {strides = array<i32>} : memref<8x32xbf16, #tpu.memory_space<vmem>>, vector<8x32xbf16>,
    %17 = arith.truncf %12 : vector<8x32xf32> to vector<8x32xbf16>
    %c0_17 = arith.constant 0 : index
    %c0_18 = arith.constant 0 : index
    %18 = vector.load %arg13[%c0_17, %c0_18] : memref<8x32xbf16, #tpu.memory_space<vmem>>, vector<8x32xbf16>
    tpu.vector_store %arg13[%c0_17, %c0_18], %17 {strides = array<i32>} : memref<8x32xbf16, #tpu.memory_space<vmem>>, vector<8x32xbf16>,
    %c1_i32 = arith.constant 1 : i32
    %19 = arith.muli %arg0, %c1_i32 : i32
    %c0_i32 = arith.constant 0 : i32
    %c8_i32 = arith.constant 8 : i32
    %20 = arith.muli %c0_i32, %c8_i32 : i32
    %21 = tpu.assume_multiple %20, 8 : i32
    %c8_i32_19 = arith.constant 8 : i32
    %22 = arith.muli %c0_i32, %c8_i32_19 : i32
    %23 = tpu.assume_multiple %22, 8 : i32
    %24 = arith.addi %19, %c0_i32 : i32
    %25 = arith.index_cast %24 : i32 to index
    %c0_20 = arith.constant 0 : index
    %26 = vector.load %arg3[%25, %c0_20] : memref<2x8xf32, #tpu.memory_space<vmem>>, vector<1x8xf32>
    %cst_21 = arith.constant 1.000000e+00 : f32
    %27 = vector.broadcast %cst_21 : f32 to vector<1x8xf32>
    %28 = arith.subf %27, %26 : vector<1x8xf32>
    %29 = vector.shape_cast %28 : vector<1x8xf32> to vector<1x8xf32>
    %30 = vector.broadcast %29 : vector<1x8xf32> to vector<8x8xf32>
    %cst_22 = arith.constant 0.000000e+00 : f32
    %31 = vector.broadcast %cst_22 : f32 to vector<8x8xf32>
    %32 = arith.cmpf one, %30, %31 : vector<8x8xf32>
    %33 = arith.index_cast %21 : i32 to index
    %c0_23 = arith.constant 0 : index
    %34 = vector.load %arg11[%33, %c0_23] : memref<8x32xbf16, #tpu.memory_space<vmem>>, vector<8x8xbf16>
    %35 = arith.index_cast %23 : i32 to index
    %c0_24 = arith.constant 0 : index
    %36 = vector.load %arg12[%35, %c0_24] : memref<8x32xbf16, #tpu.memory_space<vmem>>, vector<8x8xbf16>
    %37 = arith.index_cast %23 : i32 to index
    %c0_25 = arith.constant 0 : index
    %38 = vector.load %arg13[%37, %c0_25] : memref<8x32xbf16, #tpu.memory_space<vmem>>, vector<8x8xbf16>
    %cst_26 = arith.constant dense<0.000000e+00> : vector<8x8xf32>
    %39 = tpu.matmul %34, %36, %cst_26 {dimension_numbers = #tpu.dot_dimension_numbers<[1], [1], [0], [0], [0, 0, 1, 0], [], []>} : vector<8x8xbf16>, vector<8x8xbf16>, vector<8x8xf32> -> vector<8x8xf32>
    %cst_27 = arith.constant 1.000000e-10 : f32
    %40 = vector.broadcast %cst_27 : f32 to vector<8x8xf32>
    %41 = arith.select %32, %40, %39 : vector<8x8xi1>, vector<8x8xf32>
    %cst_28 = arith.constant dense<0xFF800000> : vector<8xf32>
    %42 = vector.multi_reduction <maximumf>, %41, %cst_28 [1] : vector<8x8xf32> to vector<8xf32>
    %43 = vector.shape_cast %42 : vector<8xf32> to vector<8x1xf32>
    %44 = vector.broadcast %43 : vector<8x1xf32> to vector<8x8xf32>
    %45 = arith.subf %41, %44 : vector<8x8xf32>
    %46 = math.exp %45 : vector<8x8xf32>
    %cst_29 = arith.constant dense<0.000000e+00> : vector<8xf32>
    %47 = vector.multi_reduction <add>, %46, %cst_29 [1] : vector<8x8xf32> to vector<8xf32>
    %48 = vector.shape_cast %47 : vector<8xf32> to vector<8x1xf32>
    %49 = tpu.reciprocal %48 {approx = true} : vector<8x1xf32> -> vector<8x1xf32>
    %50 = vector.broadcast %49 : vector<8x1xf32> to vector<8x8xf32>
    %51 = arith.mulf %46, %50 : vector<8x8xf32>
    %52 = arith.truncf %51 : vector<8x8xf32> to vector<8x8xbf16>
    %cst_30 = arith.constant dense<0.000000e+00> : vector<8x8xf32>
    %53 = tpu.matmul %52, %38, %cst_30 {dimension_numbers = #tpu.dot_dimension_numbers<[1], [0], [0], [1], [0, 0, 1, 1], [], []>} : vector<8x8xbf16>, vector<8x8xbf16>, vector<8x8xf32> -> vector<8x8xf32>
    %54 = arith.truncf %53 : vector<8x8xf32> to vector<8x8xbf16>
    %55 = arith.index_cast %21 : i32 to index
    %c0_31 = arith.constant 0 : index
    %56 = vector.load %arg14[%55, %c0_31] : memref<8x32xbf16, #tpu.memory_space<vmem>>, vector<8x8xbf16>
    tpu.vector_store %arg14[%55, %c0_31], %54 {strides = array<i32>} : memref<8x32xbf16, #tpu.memory_space<vmem>>, vector<8x8xbf16>,
    %57 = arith.index_cast %21 : i32 to index
    %c8 = arith.constant 8 : index
    %58 = vector.load %arg11[%57, %c8] : memref<8x32xbf16, #tpu.memory_space<vmem>>, vector<8x8xbf16>
    %59 = arith.index_cast %23 : i32 to index
    %c8_32 = arith.constant 8 : index
    %60 = vector.load %arg12[%59, %c8_32] : memref<8x32xbf16, #tpu.memory_space<vmem>>, vector<8x8xbf16>
    %61 = arith.index_cast %23 : i32 to index
    %c8_33 = arith.constant 8 : index
    %62 = vector.load %arg13[%61, %c8_33] : memref<8x32xbf16, #tpu.memory_space<vmem>>, vector<8x8xbf16>
    %cst_34 = arith.constant dense<0.000000e+00> : vector<8x8xf32>
    %63 = tpu.matmul %58, %60, %cst_34 {dimension_numbers = #tpu.dot_dimension_numbers<[1], [1], [0], [0], [0, 0, 1, 0], [], []>} : vector<8x8xbf16>, vector<8x8xbf16>, vector<8x8xf32> -> vector<8x8xf32>
    %cst_35 = arith.constant 1.000000e-10 : f32
    %64 = vector.broadcast %cst_35 : f32 to vector<8x8xf32>
    %65 = arith.select %32, %64, %63 : vector<8x8xi1>, vector<8x8xf32>
    %cst_36 = arith.constant dense<0xFF800000> : vector<8xf32>
    %66 = vector.multi_reduction <maximumf>, %65, %cst_36 [1] : vector<8x8xf32> to vector<8xf32>
    %67 = vector.shape_cast %66 : vector<8xf32> to vector<8x1xf32>
    %68 = vector.broadcast %67 : vector<8x1xf32> to vector<8x8xf32>
    %69 = arith.subf %65, %68 : vector<8x8xf32>
    %70 = math.exp %69 : vector<8x8xf32>
    %cst_37 = arith.constant dense<0.000000e+00> : vector<8xf32>
    %71 = vector.multi_reduction <add>, %70, %cst_37 [1] : vector<8x8xf32> to vector<8xf32>
    %72 = vector.shape_cast %71 : vector<8xf32> to vector<8x1xf32>
    %73 = tpu.reciprocal %72 {approx = true} : vector<8x1xf32> -> vector<8x1xf32>
    %74 = vector.broadcast %73 : vector<8x1xf32> to vector<8x8xf32>
    %75 = arith.mulf %70, %74 : vector<8x8xf32>
    %76 = arith.truncf %75 : vector<8x8xf32> to vector<8x8xbf16>
    %cst_38 = arith.constant dense<0.000000e+00> : vector<8x8xf32>
    %77 = tpu.matmul %76, %62, %cst_38 {dimension_numbers = #tpu.dot_dimension_numbers<[1], [0], [0], [1], [0, 0, 1, 1], [], []>} : vector<8x8xbf16>, vector<8x8xbf16>, vector<8x8xf32> -> vector<8x8xf32>
    %78 = arith.truncf %77 : vector<8x8xf32> to vector<8x8xbf16>
    %79 = arith.index_cast %21 : i32 to index
    %c8_39 = arith.constant 8 : index
    %80 = vector.load %arg14[%79, %c8_39] : memref<8x32xbf16, #tpu.memory_space<vmem>>, vector<8x8xbf16>
    tpu.vector_store %arg14[%79, %c8_39], %78 {strides = array<i32>} : memref<8x32xbf16, #tpu.memory_space<vmem>>, vector<8x8xbf16>,
    %81 = arith.index_cast %21 : i32 to index
    %c16 = arith.constant 16 : index
    %82 = vector.load %arg11[%81, %c16] : memref<8x32xbf16, #tpu.memory_space<vmem>>, vector<8x8xbf16>
    %83 = arith.index_cast %23 : i32 to index
    %c16_40 = arith.constant 16 : index
    %84 = vector.load %arg12[%83, %c16_40] : memref<8x32xbf16, #tpu.memory_space<vmem>>, vector<8x8xbf16>
    %85 = arith.index_cast %23 : i32 to index
    %c16_41 = arith.constant 16 : index
    %86 = vector.load %arg13[%85, %c16_41] : memref<8x32xbf16, #tpu.memory_space<vmem>>, vector<8x8xbf16>
    %cst_42 = arith.constant dense<0.000000e+00> : vector<8x8xf32>
    %87 = tpu.matmul %82, %84, %cst_42 {dimension_numbers = #tpu.dot_dimension_numbers<[1], [1], [0], [0], [0, 0, 1, 0], [], []>} : vector<8x8xbf16>, vector<8x8xbf16>, vector<8x8xf32> -> vector<8x8xf32>
    %cst_43 = arith.constant 1.000000e-10 : f32
    %88 = vector.broadcast %cst_43 : f32 to vector<8x8xf32>
    %89 = arith.select %32, %88, %87 : vector<8x8xi1>, vector<8x8xf32>
    %cst_44 = arith.constant dense<0xFF800000> : vector<8xf32>
    %90 = vector.multi_reduction <maximumf>, %89, %cst_44 [1] : vector<8x8xf32> to vector<8xf32>
    %91 = vector.shape_cast %90 : vector<8xf32> to vector<8x1xf32>
    %92 = vector.broadcast %91 : vector<8x1xf32> to vector<8x8xf32>
    %93 = arith.subf %89, %92 : vector<8x8xf32>
    %94 = math.exp %93 : vector<8x8xf32>
    %cst_45 = arith.constant dense<0.000000e+00> : vector<8xf32>
    %95 = vector.multi_reduction <add>, %94, %cst_45 [1] : vector<8x8xf32> to vector<8xf32>
    %96 = vector.shape_cast %95 : vector<8xf32> to vector<8x1xf32>
    %97 = tpu.reciprocal %96 {approx = true} : vector<8x1xf32> -> vector<8x1xf32>
    %98 = vector.broadcast %97 : vector<8x1xf32> to vector<8x8xf32>
    %99 = arith.mulf %94, %98 : vector<8x8xf32>
    %100 = arith.truncf %99 : vector<8x8xf32> to vector<8x8xbf16>
    %cst_46 = arith.constant dense<0.000000e+00> : vector<8x8xf32>
    %101 = tpu.matmul %100, %86, %cst_46 {dimension_numbers = #tpu.dot_dimension_numbers<[1], [0], [0], [1], [0, 0, 1, 1], [], []>} : vector<8x8xbf16>, vector<8x8xbf16>, vector<8x8xf32> -> vector<8x8xf32>
    %102 = arith.truncf %101 : vector<8x8xf32> to vector<8x8xbf16>
    %103 = arith.index_cast %21 : i32 to index
    %c16_47 = arith.constant 16 : index
    %104 = vector.load %arg14[%103, %c16_47] : memref<8x32xbf16, #tpu.memory_space<vmem>>, vector<8x8xbf16>
    tpu.vector_store %arg14[%103, %c16_47], %102 {strides = array<i32>} : memref<8x32xbf16, #tpu.memory_space<vmem>>, vector<8x8xbf16>,
    %105 = arith.index_cast %21 : i32 to index
    %c24 = arith.constant 24 : index
    %106 = vector.load %arg11[%105, %c24] : memref<8x32xbf16, #tpu.memory_space<vmem>>, vector<8x8xbf16>
    %107 = arith.index_cast %23 : i32 to index
    %c24_48 = arith.constant 24 : index
    %108 = vector.load %arg12[%107, %c24_48] : memref<8x32xbf16, #tpu.memory_space<vmem>>, vector<8x8xbf16>
    %109 = arith.index_cast %23 : i32 to index
    %c24_49 = arith.constant 24 : index
    %110 = vector.load %arg13[%109, %c24_49] : memref<8x32xbf16, #tpu.memory_space<vmem>>, vector<8x8xbf16>
    %cst_50 = arith.constant dense<0.000000e+00> : vector<8x8xf32>
    %111 = tpu.matmul %106, %108, %cst_50 {dimension_numbers = #tpu.dot_dimension_numbers<[1], [1], [0], [0], [0, 0, 1, 0], [], []>} : vector<8x8xbf16>, vector<8x8xbf16>, vector<8x8xf32> -> vector<8x8xf32>
    %cst_51 = arith.constant 1.000000e-10 : f32
    %112 = vector.broadcast %cst_51 : f32 to vector<8x8xf32>
    %113 = arith.select %32, %112, %111 : vector<8x8xi1>, vector<8x8xf32>
    %cst_52 = arith.constant dense<0xFF800000> : vector<8xf32>
    %114 = vector.multi_reduction <maximumf>, %113, %cst_52 [1] : vector<8x8xf32> to vector<8xf32>
    %115 = vector.shape_cast %114 : vector<8xf32> to vector<8x1xf32>
    %116 = vector.broadcast %115 : vector<8x1xf32> to vector<8x8xf32>
    %117 = arith.subf %113, %116 : vector<8x8xf32>
    %118 = math.exp %117 : vector<8x8xf32>
    %cst_53 = arith.constant dense<0.000000e+00> : vector<8xf32>
    %119 = vector.multi_reduction <add>, %118, %cst_53 [1] : vector<8x8xf32> to vector<8xf32>
    %120 = vector.shape_cast %119 : vector<8xf32> to vector<8x1xf32>
    %121 = tpu.reciprocal %120 {approx = true} : vector<8x1xf32> -> vector<8x1xf32>
    %122 = vector.broadcast %121 : vector<8x1xf32> to vector<8x8xf32>
    %123 = arith.mulf %118, %122 : vector<8x8xf32>
    %124 = arith.truncf %123 : vector<8x8xf32> to vector<8x8xbf16>
    %cst_54 = arith.constant dense<0.000000e+00> : vector<8x8xf32>
    %125 = tpu.matmul %124, %110, %cst_54 {dimension_numbers = #tpu.dot_dimension_numbers<[1], [0], [0], [1], [0, 0, 1, 1], [], []>} : vector<8x8xbf16>, vector<8x8xbf16>, vector<8x8xf32> -> vector<8x8xf32>
    %126 = arith.truncf %125 : vector<8x8xf32> to vector<8x8xbf16>
    %127 = arith.index_cast %21 : i32 to index
    %c24_55 = arith.constant 24 : index
    %128 = vector.load %arg14[%127, %c24_55] : memref<8x32xbf16, #tpu.memory_space<vmem>>, vector<8x8xbf16>
    tpu.vector_store %arg14[%127, %c24_55], %126 {strides = array<i32>} : memref<8x32xbf16, #tpu.memory_space<vmem>>, vector<8x8xbf16>,
    %c1_i32_56 = arith.constant 1 : i32
    %c0_57 = arith.constant 0 : index
    %c0_58 = arith.constant 0 : index
    %129 = vector.load %arg14[%c0_57, %c0_58] : memref<8x32xbf16, #tpu.memory_space<vmem>>, vector<8x32xbf16>
    %c0_59 = arith.constant 0 : index
    %c0_60 = arith.constant 0 : index
    %130 = vector.load %arg8[%c0_59, %c0_60] : memref<32x32xbf16, #tpu.memory_space<vmem>>, vector<32x32xbf16>
    %cst_61 = arith.constant dense<0.000000e+00> : vector<8x32xf32>
    %131 = tpu.matmul %129, %130, %cst_61 {dimension_numbers = #tpu.dot_dimension_numbers<[1], [0], [0], [1], [0, 0, 1, 1], [], []>} : vector<8x32xbf16>, vector<32x32xbf16>, vector<8x32xf32> -> vector<8x32xf32>
    %c0_62 = arith.constant 0 : index
    %c0_63 = arith.constant 0 : index
    %132 = vector.load %arg9[%c0_62, %c0_63] : memref<1x32xf32, #tpu.memory_space<vmem>>, vector<1x32xf32>
    %133 = vector.broadcast %132 : vector<1x32xf32> to vector<8x32xf32>
    %134 = arith.addf %131, %133 : vector<8x32xf32>
    %c0_64 = arith.constant 0 : index
    %c0_65 = arith.constant 0 : index
    %135 = vector.load %arg10[%c0_64, %c0_65] : memref<8x32xf32, #tpu.memory_space<vmem>>, vector<8x32xf32>
    tpu.vector_store %arg10[%c0_64, %c0_65], %134 {strides = array<i32>} : memref<8x32xf32, #tpu.memory_space<vmem>>, vector<8x32xf32>,
    return
  }
  func.func @transform_0(%arg0: i32) -> (i32, i32) {
    %c0_i32 = arith.constant 0 : i32
    %c0_i32_0 = arith.constant 0 : i32
    return %arg0, %c0_i32 : i32, i32
  }
  func.func @transform_1(%arg0: i32) -> (i32, i32) {
    %c0_i32 = arith.constant 0 : i32
    %c0_i32_0 = arith.constant 0 : i32
    return %arg0, %c0_i32 : i32, i32
  }
  func.func @transform_2(%arg0: i32) -> (i32, i32) {
    %c0_i32 = arith.constant 0 : i32
    %c0_i32_0 = arith.constant 0 : i32
    %c0_i32_1 = arith.constant 0 : i32
    return %c0_i32, %c0_i32_0 : i32, i32
  }
  func.func @transform_3(%arg0: i32) -> (i32, i32) {
    %c0_i32 = arith.constant 0 : i32
    %c0_i32_0 = arith.constant 0 : i32
    %c0_i32_1 = arith.constant 0 : i32
    return %c0_i32, %c0_i32_0 : i32, i32
  }
  func.func @transform_4(%arg0: i32) -> (i32, i32) {
    %c0_i32 = arith.constant 0 : i32
    %c0_i32_0 = arith.constant 0 : i32
    %c0_i32_1 = arith.constant 0 : i32
    return %c0_i32, %c0_i32_0 : i32, i32
  }
  func.func @transform_5(%arg0: i32) -> (i32, i32) {
    %c0_i32 = arith.constant 0 : i32
    %c0_i32_0 = arith.constant 0 : i32
    %c0_i32_1 = arith.constant 0 : i32
    return %c0_i32, %c0_i32_0 : i32, i32
  }
  func.func @transform_6(%arg0: i32) -> (i32, i32) {
    %c0_i32 = arith.constant 0 : i32
    %c0_i32_0 = arith.constant 0 : i32
    %c0_i32_1 = arith.constant 0 : i32
    return %c0_i32, %c0_i32_0 : i32, i32
  }
  func.func @transform_7(%arg0: i32) -> (i32, i32) {
    %c0_i32 = arith.constant 0 : i32
    %c0_i32_0 = arith.constant 0 : i32
    %c0_i32_1 = arith.constant 0 : i32
    return %c0_i32, %c0_i32_0 : i32, i32
  }
  func.func @transform_8(%arg0: i32) -> (i32, i32) {
    %c0_i32 = arith.constant 0 : i32
    %c0_i32_0 = arith.constant 0 : i32
    %c0_i32_1 = arith.constant 0 : i32
    return %c0_i32, %c0_i32_0 : i32, i32
  }
  func.func @transform_9(%arg0: i32) -> (i32, i32) {
    %c0_i32 = arith.constant 0 : i32
    %c0_i32_0 = arith.constant 0 : i32
    return %arg0, %c0_i32 : i32, i32
  }
}

</mosaic_0001>

<llo_original>
// kernel: tpu_custom_call.1
$region0: #{tpu_custom_call.1}
  #allocation0 [shape = 'u32[]', space=smem, size = 0x4, offset = 0x4, fixed_abs, tag = 'smem constant byte address 0x4 - core index']
  #allocation1 [shape = 'u32[144,128]{1,0:T(1,128)}', space=vmem, size = 0x12000, scoped, tag = 'internal scratch']
  #allocation2 [shape = 'bf16[8,32]{1,0:T(8,128)(2,1)}', space=vmem, size = 0x800, scoped, tag = 'scratch operand']
  #allocation3 [shape = 'bf16[8,32]{1,0:T(8,128)(2,1)}', space=vmem, size = 0x800, scoped, tag = 'scratch operand']
  #allocation4 [shape = 'bf16[8,32]{1,0:T(8,128)(2,1)}', space=vmem, size = 0x800, scoped, tag = 'scratch operand']
  #allocation5 [shape = 'bf16[8,32]{1,0:T(8,128)(2,1)}', space=vmem, size = 0x800, scoped, tag = 'scratch operand']
  %s0 = inlined_call_operand.hbm [shape: f32[16,32], index: 0, kind: input, shape index: {}]
  %s1 = inlined_call_operand.hbm [shape: f32[16,32], index: 1, kind: input, shape index: {}]
  %s2 = inlined_call_operand.vmem [shape: f32[2,8], index: 2, kind: input, shape index: {}]
  %s3 = inlined_call_operand.hbm [shape: bf16[32,32], index: 3, kind: input, shape index: {}]
  %s4 = inlined_call_operand.hbm [shape: f32[1,32], index: 4, kind: input, shape index: {}]
  %s5 = inlined_call_operand.vmem [shape: bf16[32,32], index: 5, kind: input, shape index: {}]
  %s6 = inlined_call_operand.hbm [shape: bf16[32,32], index: 6, kind: input, shape index: {}]
  %s7 = inlined_call_operand.hbm [shape: bf16[32,32], index: 7, kind: input, shape index: {}]
  %s8 = inlined_call_operand.vmem [shape: f32[1,32], index: 8, kind: input, shape index: {}]
  %s9 = inlined_call_operand.hbm [shape: f32[16,32], index: 9, kind: output, shape index: {}]
  %s10 = sld [smem:[#allocation0]]
  $region93: #{tpu_custom_call.1} parent=0
    _
  %s12 = ssub.s32 1, %s10
  %s13 = scalar_select 0, %s12, %s10
  $region1: #{tpu_custom_call.1} parent=0
    #allocation6 [shape = 'u8[8192]{0}', space=vmem, size = 0x2000, scoped, tag = 'input window, operand 0']
    #allocation7 [shape = 's32[2]{0}', space=sflag, size = 0x8, scoped, tag = 'scoped memory for tpu_custom_call.1']
    #allocation8 [shape = 's32[2]{0}', space=sflag, size = 0x8, scoped, tag = 'scoped memory for tpu_custom_call.1']
    #allocation9 [shape = 'u8[8192]{0}', space=vmem, size = 0x2000, scoped, tag = 'input window, operand 1']
    #allocation10 [shape = 's32[2]{0}', space=sflag, size = 0x8, scoped, tag = 'scoped memory for tpu_custom_call.1']
    #allocation11 [shape = 'u8[8192]{0}', space=vmem, size = 0x2000, scoped, tag = 'input window, operand 3, single buffered']
    #allocation12 [shape = 'u8[512]{0}', space=vmem, size = 0x400, scoped, tag = 'input window, operand 4, single buffered']
    #allocation13 [shape = 's32[1]{0}', space=sflag, size = 0x4, scoped, tag = 'scoped memory for tpu_custom_call.1']
    #allocation14 [shape = 'u8[8192]{0}', space=vmem, size = 0x2000, scoped, tag = 'input window, operand 6, single buffered']
    #allocation15 [shape = 'u8[8192]{0}', space=vmem, size = 0x2000, scoped, tag = 'input window, operand 7, single buffered']
    #allocation16 [shape = 's32[1]{0}', space=sflag, size = 0x4, scoped, tag = 'scoped memory for tpu_custom_call.1']
    #allocation17 [shape = 'u8[8192]{0}', space=vmem, size = 0x2000, scoped, tag = 'output window, operand 0']
    %14 = vsyncpa [#allocation7], 0
    %s15 = scalar_lea.sflag [#allocation7], 1
    %16 = vsyncpa %s15, 0
    %17 = vsyncpa [#allocation10], 0
    %s18 = scalar_lea.sflag [#allocation10], 1
    %19 = vsyncpa %s18, 0
    %20 = vsyncpa [#allocation13], 0
    %21 = vsyncpa [#allocation16], 0
    %22 = vsyncpa [#allocation8], 0
    %s23 = scalar_lea.sflag [#allocation8], 1
    %24 = vsyncpa %s23, 0
    loop: start=0, step=1, limit=4
    $region2: #{tpu_custom_call.1} parent=1 // loop_pre_header
      _
    $region3: #{tpu_custom_call.1} parent=1 // loop_header
      %s26 = sphi 0, %s30
      %p27 = scmp.ge.s32.totalorder %s26, 4
      %s36 = sphi 0, %s38
      %s39 = sphi 0, %s36
      %s40 = sphi 0, %s39
      %s56 = sphi 0, %s40
      %s62 = sphi 0, %s64
      %s65 = sphi 0, %s62
      %s66 = sphi 0, %s65
      %s82 = sphi 0, %s66
      %s86 = sphi 0, %s86
      %s88 = sphi 0, %s86
      %s89 = sphi 0, %s88
      %s103 = sphi 0, %s89
      %s107 = sphi 0, %s107
      %s109 = sphi 0, %s107
      %s110 = sphi 0, %s109
      %s124 = sphi 0, %s110
      %s128 = sphi 0, %s128
      %s130 = sphi 0, %s128
      %s131 = sphi 0, %s130
      %s145 = sphi 0, %s131
      %s149 = sphi 0, %s149
      %s151 = sphi 0, %s149
      %s152 = sphi 0, %s151
      %s166 = sphi 0, %s152
      %s170 = sphi 0, %s170
      %s172 = sphi 0, %s170
      %s173 = sphi 0, %s172
      %s187 = sphi 0, %s173
      %s191 = sphi 0, %s191
      %s193 = sphi 0, %s191
      %s194 = sphi 0, %s193
      %s208 = sphi 0, %s194
      %s212 = sphi 0, %s212
      %s214 = sphi 0, %s212
      %s215 = sphi 0, %s214
      %s229 = sphi 0, %s215
      %s235 = sphi 0, %s237
      %s238 = sphi 0, %s235
      %s239 = sphi 0, %s238
      %s255 = sphi 0, %s239
    $region4: #{tpu_custom_call.1} parent=1 // loop_header_branch
      %29 = sbr.rel (%p27) target = $region8
    $region5: #{tpu_custom_call.1} parent=1 // loop_body
      %s31 = ssub.s32 %s26, 1
      %s32 = ssub.s32 %s26, 2
      %s33 = sadd.s32 %s26, 1
      %s34 = ssub.s32 %s26, %s33
      %p35 = scmp.eq.s32.totalorder %s34, 0
      %s37 = sadd.s32 %s36, 1
      %s38 = scalar_select %p35, %s36, %s37
      %p41 = pneg %p35
      %p42 = scmp.eq.s32.totalorder %s26, 1
      %p43 = por %p41, %p42
      %p44 = scmp.ne.s32.totalorder %s36, %s39
      %p45 = scmp.eq.s32.totalorder %s26, 0
      %p46 = por %p44, %p45
      %p47 = scmp.ne.s32.totalorder %s36, %s39
      %p48 = scmp.eq.s32.totalorder %s31, 1
      %p49 = por %p47, %p48
      %p50 = scmp.ne.s32.totalorder %s39, %s40
      %p51 = scmp.eq.s32.totalorder %s31, 0
      %p52 = por %p50, %p51
      %p53 = scmp.ne.s32.totalorder %s39, %s40
      %p54 = scmp.eq.s32.totalorder %s32, 1
      %p55 = por %p53, %p54
      %p57 = scmp.ne.s32.totalorder %s40, %s56
      %p58 = scmp.eq.s32.totalorder %s32, 0
      %p59 = por %p57, %p58
      %s60 = ssub.s32 %s26, %s33
      %p61 = scmp.eq.s32.totalorder %s60, 0
      %s63 = sadd.s32 %s62, 1
      %s64 = scalar_select %p61, %s62, %s63
      %p67 = pneg %p61
      %p68 = scmp.eq.s32.totalorder %s26, 1
      %p69 = por %p67, %p68
      %p70 = scmp.ne.s32.totalorder %s62, %s65
      %p71 = scmp.eq.s32.totalorder %s26, 0
      %p72 = por %p70, %p71
      %p73 = scmp.ne.s32.totalorder %s62, %s65
      %p74 = scmp.eq.s32.totalorder %s31, 1
      %p75 = por %p73, %p74
      %p76 = scmp.ne.s32.totalorder %s65, %s66
      %p77 = scmp.eq.s32.totalorder %s31, 0
      %p78 = por %p76, %p77
      %p79 = scmp.ne.s32.totalorder %s65, %s66
      %p80 = scmp.eq.s32.totalorder %s32, 1
      %p81 = por %p79, %p80
      %p83 = scmp.ne.s32.totalorder %s66, %s82
      %p84 = scmp.eq.s32.totalorder %s32, 0
      %p85 = por %p83, %p84
      %s87 = sadd.s32 %s86, 1
      %p90 = scmp.eq.s32.totalorder %s26, 1
      %p91 = scmp.ne.s32.totalorder %s86, %s88
      %p92 = scmp.eq.s32.totalorder %s26, 0
      %p93 = por %p91, %p92
      %p94 = scmp.ne.s32.totalorder %s86, %s88
      %p95 = scmp.eq.s32.totalorder %s31, 1
      %p96 = por %p94, %p95
      %p97 = scmp.ne.s32.totalorder %s88, %s89
      %p98 = scmp.eq.s32.totalorder %s31, 0
      %p99 = por %p97, %p98
      %p100 = scmp.ne.s32.totalorder %s88, %s89
      %p101 = scmp.eq.s32.totalorder %s32, 1
      %p102 = por %p100, %p101
      %p104 = scmp.ne.s32.totalorder %s89, %s103
      %p105 = scmp.eq.s32.totalorder %s32, 0
      %p106 = por %p104, %p105
      %s108 = sadd.s32 %s107, 1
      %p111 = scmp.eq.s32.totalorder %s26, 1
      %p112 = scmp.ne.s32.totalorder %s107, %s109
      %p113 = scmp.eq.s32.totalorder %s26, 0
      %p114 = por %p112, %p113
      %p115 = scmp.ne.s32.totalorder %s107, %s109
      %p116 = scmp.eq.s32.totalorder %s31, 1
      %p117 = por %p115, %p116
      %p118 = scmp.ne.s32.totalorder %s109, %s110
      %p119 = scmp.eq.s32.totalorder %s31, 0
      %p120 = por %p118, %p119
      %p121 = scmp.ne.s32.totalorder %s109, %s110
      %p122 = scmp.eq.s32.totalorder %s32, 1
      %p123 = por %p121, %p122
      %p125 = scmp.ne.s32.totalorder %s110, %s124
      %p126 = scmp.eq.s32.totalorder %s32, 0
      %p127 = por %p125, %p126
      %s129 = sadd.s32 %s128, 1
      %p132 = scmp.eq.s32.totalorder %s26, 1
      %p133 = scmp.ne.s32.totalorder %s128, %s130
      %p134 = scmp.eq.s32.totalorder %s26, 0
      %p135 = por %p133, %p134
      %p136 = scmp.ne.s32.totalorder %s128, %s130
      %p137 = scmp.eq.s32.totalorder %s31, 1
      %p138 = por %p136, %p137
      %p139 = scmp.ne.s32.totalorder %s130, %s131
      %p140 = scmp.eq.s32.totalorder %s31, 0
      %p141 = por %p139, %p140
      %p142 = scmp.ne.s32.totalorder %s130, %s131
      %p143 = scmp.eq.s32.totalorder %s32, 1
      %p144 = por %p142, %p143
      %p146 = scmp.ne.s32.totalorder %s131, %s145
      %p147 = scmp.eq.s32.totalorder %s32, 0
      %p148 = por %p146, %p147
      %s150 = sadd.s32 %s149, 1
      %p153 = scmp.eq.s32.totalorder %s26, 1
      %p154 = scmp.ne.s32.totalorder %s149, %s151
      %p155 = scmp.eq.s32.totalorder %s26, 0
      %p156 = por %p154, %p155
      %p157 = scmp.ne.s32.totalorder %s149, %s151
      %p158 = scmp.eq.s32.totalorder %s31, 1
      %p159 = por %p157, %p158
      %p160 = scmp.ne.s32.totalorder %s151, %s152
      %p161 = scmp.eq.s32.totalorder %s31, 0
      %p162 = por %p160, %p161
      %p163 = scmp.ne.s32.totalorder %s151, %s152
      %p164 = scmp.eq.s32.totalorder %s32, 1
      %p165 = por %p163, %p164
      %p167 = scmp.ne.s32.totalorder %s152, %s166
      %p168 = scmp.eq.s32.totalorder %s32, 0
      %p169 = por %p167, %p168
      %s171 = sadd.s32 %s170, 1
      %p174 = scmp.eq.s32.totalorder %s26, 1
      %p175 = scmp.ne.s32.totalorder %s170, %s172
      %p176 = scmp.eq.s32.totalorder %s26, 0
      %p177 = por %p175, %p176
      %p178 = scmp.ne.s32.totalorder %s170, %s172
      %p179 = scmp.eq.s32.totalorder %s31, 1
      %p180 = por %p178, %p179
      %p181 = scmp.ne.s32.totalorder %s172, %s173
      %p182 = scmp.eq.s32.totalorder %s31, 0
      %p183 = por %p181, %p182
      %p184 = scmp.ne.s32.totalorder %s172, %s173
      %p185 = scmp.eq.s32.totalorder %s32, 1
      %p186 = por %p184, %p185
      %p188 = scmp.ne.s32.totalorder %s173, %s187
      %p189 = scmp.eq.s32.totalorder %s32, 0
      %p190 = por %p188, %p189
      %s192 = sadd.s32 %s191, 1
      %p195 = scmp.eq.s32.totalorder %s26, 1
      %p196 = scmp.ne.s32.totalorder %s191, %s193
      %p197 = scmp.eq.s32.totalorder %s26, 0
      %p198 = por %p196, %p197
      %p199 = scmp.ne.s32.totalorder %s191, %s193
      %p200 = scmp.eq.s32.totalorder %s31, 1
      %p201 = por %p199, %p200
      %p202 = scmp.ne.s32.totalorder %s193, %s194
      %p203 = scmp.eq.s32.totalorder %s31, 0
      %p204 = por %p202, %p203
      %p205 = scmp.ne.s32.totalorder %s193, %s194
      %p206 = scmp.eq.s32.totalorder %s32, 1
      %p207 = por %p205, %p206
      %p209 = scmp.ne.s32.totalorder %s194, %s208
      %p210 = scmp.eq.s32.totalorder %s32, 0
      %p211 = por %p209, %p210
      %s213 = sadd.s32 %s212, 1
      %p216 = scmp.eq.s32.totalorder %s26, 1
      %p217 = scmp.ne.s32.totalorder %s212, %s214
      %p218 = scmp.eq.s32.totalorder %s26, 0
      %p219 = por %p217, %p218
      %p220 = scmp.ne.s32.totalorder %s212, %s214
      %p221 = scmp.eq.s32.totalorder %s31, 1
      %p222 = por %p220, %p221
      %p223 = scmp.ne.s32.totalorder %s214, %s215
      %p224 = scmp.eq.s32.totalorder %s31, 0
      %p225 = por %p223, %p224
      %p226 = scmp.ne.s32.totalorder %s214, %s215
      %p227 = scmp.eq.s32.totalorder %s32, 1
      %p228 = por %p226, %p227
      %p230 = scmp.ne.s32.totalorder %s215, %s229
      %p231 = scmp.eq.s32.totalorder %s32, 0
      %p232 = por %p230, %p231
      %s233 = ssub.s32 %s26, %s33
      %p234 = scmp.eq.s32.totalorder %s233, 0
      %s236 = sadd.s32 %s235, 1
      %s237 = scalar_select %p234, %s235, %s236
      %p240 = pneg %p234
      %p241 = scmp.eq.s32.totalorder %s26, 1
      %p242 = por %p240, %p241
      %p243 = scmp.ne.s32.totalorder %s235, %s238
      %p244 = scmp.eq.s32.totalorder %s26, 0
      %p245 = por %p243, %p244
      %p246 = scmp.ne.s32.totalorder %s235, %s238
      %p247 = scmp.eq.s32.totalorder %s31, 1
      %p248 = por %p246, %p247
      %p249 = scmp.ne.s32.totalorder %s238, %s239
      %p250 = scmp.eq.s32.totalorder %s31, 0
      %p251 = por %p249, %p250
      %p252 = scmp.ne.s32.totalorder %s238, %s239
      %p253 = scmp.eq.s32.totalorder %s32, 1
      %p254 = por %p252, %p253
      %p256 = scmp.ne.s32.totalorder %s239, %s255
      %p257 = scmp.eq.s32.totalorder %s32, 0
      %p258 = por %p256, %p257
      %p259 = scmp.le.s32.totalorder 1, %s26
      %p260 = scmp.lt.s32.totalorder %s26, 3
      %p261 = pnand %p259, %p260
      %p262 = pneg %p261
      // Predicated region
      $region9: #{tpu_custom_call.1} parent=5 // pred_check
        _
      $region10: #{tpu_custom_call.1} parent=5 // pred_check_branch
        %264 = sbr.rel (%p261) target = $region12
      $region11: #{tpu_custom_call.1} parent=5 // pred_region
        %s265 = ssub.s32 %s26, 1
        // Predicated region
        $region13: #{tpu_custom_call.1} parent=11 // pred_check
          %p266 = pneg %p99
        $region14: #{tpu_custom_call.1} parent=11 // pred_check_branch
          %268 = sbr.rel (%p266) target = $region16
        $region15: #{tpu_custom_call.1} parent=11 // pred_region
          _
        $region16: #{tpu_custom_call.1} parent=11 // pred_fallthru
          _
        // Predicated region
        $region17: #{tpu_custom_call.1} parent=11 // pred_check
          %p269 = pneg %p120
        $region18: #{tpu_custom_call.1} parent=11 // pred_check_branch
          %271 = sbr.rel (%p269) target = $region20
        $region19: #{tpu_custom_call.1} parent=11 // pred_region
          %s273 = ssub.s32 256, 256
          %274 = vsyncadd [#allocation10], %s273
          %s275 = sshll.u32 [#allocation11], 4
          %s276 = int_to_ptr.vmem [resolvable:$true] %s275
          %281 = dma.hbm_to_vmem [thread:$0]  %s3, 256, %s276, [#allocation10], 64, 64, 4
        $region20: #{tpu_custom_call.1} parent=11 // pred_fallthru
          _
        // Predicated region
        $region21: #{tpu_custom_call.1} parent=11 // pred_check
          %p282 = pneg %p141
        $region22: #{tpu_custom_call.1} parent=11 // pred_check_branch
          %284 = sbr.rel (%p282) target = $region24
        $region23: #{tpu_custom_call.1} parent=11 // pred_region
          %s286 = ssub.s32 16, 16
          %287 = vsyncadd [#allocation13], %s286
          %s289 = sshll.u32 [#allocation12], 4
          %s290 = int_to_ptr.vmem [resolvable:$true] %s289
          %292 = dma.hbm_to_vmem [thread:$0]  %s4, 16, %s290, [#allocation13]
        $region24: #{tpu_custom_call.1} parent=11 // pred_fallthru
          _
        // Predicated region
        $region25: #{tpu_custom_call.1} parent=11 // pred_check
          %p293 = pneg %p162
        $region26: #{tpu_custom_call.1} parent=11 // pred_check_branch
          %295 = sbr.rel (%p293) target = $region28
        $region27: #{tpu_custom_call.1} parent=11 // pred_region
          _
        $region28: #{tpu_custom_call.1} parent=11 // pred_fallthru
          _
        // Predicated region
        $region29: #{tpu_custom_call.1} parent=11 // pred_check
          %p296 = pneg %p183
        $region30: #{tpu_custom_call.1} parent=11 // pred_check_branch
          %298 = sbr.rel (%p296) target = $region32
        $region31: #{tpu_custom_call.1} parent=11 // pred_region
          %s300 = ssub.s32 256, 256
          %301 = vsyncadd [#allocation13], %s300
          %s302 = sshll.u32 [#allocation14], 4
          %s303 = int_to_ptr.vmem [resolvable:$true] %s302
          %308 = dma.hbm_to_vmem [thread:$0]  %s6, 256, %s303, [#allocation13], 64, 64, 4
        $region32: #{tpu_custom_call.1} parent=11 // pred_fallthru
          _
        // Predicated region
        $region33: #{tpu_custom_call.1} parent=11 // pred_check
          %p309 = pneg %p204
        $region34: #{tpu_custom_call.1} parent=11 // pred_check_branch
          %311 = sbr.rel (%p309) target = $region36
        $region35: #{tpu_custom_call.1} parent=11 // pred_region
          %s313 = ssub.s32 256, 256
          %314 = vsyncadd [#allocation16], %s313
          %s315 = sshll.u32 [#allocation15], 4
          %s316 = int_to_ptr.vmem [resolvable:$true] %s315
          %321 = dma.hbm_to_vmem [thread:$0]  %s7, 256, %s316, [#allocation16], 64, 64, 4
        $region36: #{tpu_custom_call.1} parent=11 // pred_fallthru
          _
        // Predicated region
        $region37: #{tpu_custom_call.1} parent=11 // pred_check
          %p322 = pneg %p225
        $region38: #{tpu_custom_call.1} parent=11 // pred_check_branch
          %324 = sbr.rel (%p322) target = $region40
        $region39: #{tpu_custom_call.1} parent=11 // pred_region
          _
        $region40: #{tpu_custom_call.1} parent=11 // pred_fallthru
          _
      $region12: #{tpu_custom_call.1} parent=5 // pred_fallthru
        _
      %p325 = scmp.lt.s32.totalorder %s26, 2
      // Predicated region
      $region41: #{tpu_custom_call.1} parent=5 // pred_check
        %p326 = pneg %p325
      $region42: #{tpu_custom_call.1} parent=5 // pred_check_branch
        %328 = sbr.rel (%p326) target = $region44
      $region43: #{tpu_custom_call.1} parent=5 // pred_region
        // Predicated region
        $region45: #{tpu_custom_call.1} parent=43 // pred_check
          %p329 = pneg %p46
        $region46: #{tpu_custom_call.1} parent=43 // pred_check_branch
          %331 = sbr.rel (%p329) target = $region48
        $region47: #{tpu_custom_call.1} parent=43 // pred_region
          %s332 = sand.u32 %s36, 1
          %s333 = scalar_lea.sflag [#allocation7], %s332
          %s334 = sand.u32 %s36, 1
          %s335 = smul.addr %s334, 8
          %s336 = scalar_lea.vmem [#allocation6], %s335
          %s338 = ssub.s32 128, 128
          %339 = vsyncadd %s333, %s338
          %s340 = smul.addr %s26, 128
          %s341 = scalar_lea.hbm %s0, %s340
          %s343 = sshll.u32 %s336, 4
          %s344 = int_to_ptr.vmem [resolvable:$true] %s343
          %346 = dma.hbm_to_vmem [thread:$0]  %s341, 128, %s344, %s333
        $region48: #{tpu_custom_call.1} parent=43 // pred_fallthru
          _
        // Predicated region
        $region49: #{tpu_custom_call.1} parent=43 // pred_check
          %p347 = pneg %p72
        $region50: #{tpu_custom_call.1} parent=43 // pred_check_branch
          %349 = sbr.rel (%p347) target = $region52
        $region51: #{tpu_custom_call.1} parent=43 // pred_region
          %s350 = sand.u32 %s26, 1
          %s351 = scalar_lea.sflag [#allocation10], %s350
          %s352 = sand.u32 %s62, 1
          %s353 = smul.addr %s352, 8
          %s354 = scalar_lea.vmem [#allocation9], %s353
          %s356 = ssub.s32 128, 128
          %357 = vsyncadd %s351, %s356
          %s358 = smul.addr %s26, 128
          %s359 = scalar_lea.hbm %s1, %s358
          %s361 = sshll.u32 %s354, 4
          %s362 = int_to_ptr.vmem [resolvable:$true] %s361
          %364 = dma.hbm_to_vmem [thread:$0]  %s359, 128, %s362, %s351
        $region52: #{tpu_custom_call.1} parent=43 // pred_fallthru
          _
      $region44: #{tpu_custom_call.1} parent=5 // pred_fallthru
        _
      %p365 = scmp.le.s32.totalorder 1, %s26
      %p366 = scmp.lt.s32.totalorder %s26, 3
      %p367 = pnand %p365, %p366
      %p368 = pneg %p367
      // Predicated region
      $region53: #{tpu_custom_call.1} parent=5 // pred_check
        _
      $region54: #{tpu_custom_call.1} parent=5 // pred_check_branch
        %370 = sbr.rel (%p367) target = $region56
      $region55: #{tpu_custom_call.1} parent=5 // pred_region
        %s371 = ssub.s32 %s26, 1
        %s372 = sand.u32 %s39, 1
        %s373 = scalar_lea.sflag [#allocation7], %s372
        %s374 = sand.u32 %s39, 1
        %s375 = smul.addr %s374, 8
        %s376 = scalar_lea.vmem [#allocation6], %s375
        // Predicated region
        $region57: #{tpu_custom_call.1} parent=55 // pred_check
          %p377 = pneg %p52
        $region58: #{tpu_custom_call.1} parent=55 // pred_check_branch
          %379 = sbr.rel (%p377) target = $region60
        $region59: #{tpu_custom_call.1} parent=55 // pred_region
          %380 = dma.done %s373, 128
        $region60: #{tpu_custom_call.1} parent=55 // pred_fallthru
          _
        %s381 = sand.u32 %s31, 1
        %s382 = scalar_lea.sflag [#allocation10], %s381
        %s383 = sand.u32 %s65, 1
        %s384 = smul.addr %s383, 8
        %s385 = scalar_lea.vmem [#allocation9], %s384
        // Predicated region
        $region61: #{tpu_custom_call.1} parent=55 // pred_check
          %p386 = pneg %p78
        $region62: #{tpu_custom_call.1} parent=55 // pred_check_branch
          %388 = sbr.rel (%p386) target = $region64
        $region63: #{tpu_custom_call.1} parent=55 // pred_region
          %389 = dma.done %s382, 128
        $region64: #{tpu_custom_call.1} parent=55 // pred_fallthru
          _
        // Predicated region
        $region65: #{tpu_custom_call.1} parent=55 // pred_check
          %p390 = pneg %p120
        $region66: #{tpu_custom_call.1} parent=55 // pred_check_branch
          %392 = sbr.rel (%p390) target = $region68
        $region67: #{tpu_custom_call.1} parent=55 // pred_region
          %393 = dma.done [#allocation10], 256
        $region68: #{tpu_custom_call.1} parent=55 // pred_fallthru
          _
        // Predicated region
        $region69: #{tpu_custom_call.1} parent=55 // pred_check
          %p394 = pneg %p141
        $region70: #{tpu_custom_call.1} parent=55 // pred_check_branch
          %396 = sbr.rel (%p394) target = $region72
        $region71: #{tpu_custom_call.1} parent=55 // pred_region
          %397 = dma.done [#allocation13], 16
        $region72: #{tpu_custom_call.1} parent=55 // pred_fallthru
          _
        // Predicated region
        $region73: #{tpu_custom_call.1} parent=55 // pred_check
          %p398 = pneg %p183
        $region74: #{tpu_custom_call.1} parent=55 // pred_check_branch
          %400 = sbr.rel (%p398) target = $region76
        $region75: #{tpu_custom_call.1} parent=55 // pred_region
          %401 = dma.done [#allocation13], 256
        $region76: #{tpu_custom_call.1} parent=55 // pred_fallthru
          _
        // Predicated region
        $region77: #{tpu_custom_call.1} parent=55 // pred_check
          %p402 = pneg %p204
        $region78: #{tpu_custom_call.1} parent=55 // pred_check_branch
          %404 = sbr.rel (%p402) target = $region80
        $region79: #{tpu_custom_call.1} parent=55 // pred_region
          %405 = dma.done [#allocation16], 256
        $region80: #{tpu_custom_call.1} parent=55 // pred_fallthru
          _
        %s406 = sand.u32 %s39, 1
        %s407 = scalar_lea.sflag [#allocation7], %s406
        %s408 = sand.u32 %s39, 1
        %s409 = smul.addr %s408, 8
        %s410 = scalar_lea.vmem [#allocation6], %s409
        %p411 = pneg %p52
        %p412 = pneg %p49
        %s413 = sand.u32 %s31, 1
        %s414 = scalar_lea.sflag [#allocation10], %s413
        %s415 = sand.u32 %s65, 1
        %s416 = smul.addr %s415, 8
        %s417 = scalar_lea.vmem [#allocation9], %s416
        %p418 = pneg %p78
        %p419 = pneg %p75
        %p420 = pneg %p99
        %p421 = pneg %p96
        %p422 = pneg %p120
        %p423 = pneg %p117
        %p424 = pneg %p141
        %p425 = pneg %p138
        %p426 = pneg %p162
        %p427 = pneg %p159
        %p428 = pneg %p183
        %p429 = pneg %p180
        %p430 = pneg %p204
        %p431 = pneg %p201
        %p432 = pneg %p225
        %p433 = pneg %p222
        %p434 = pneg %p251
        %p435 = pneg %p248
        %s436 = sand.u32 %s238, 1
        %s437 = scalar_lea.sflag [#allocation8], %s436
        %s438 = sand.u32 %s238, 1
        %s439 = smul.addr %s438, 8
        %s440 = scalar_lea.vmem [#allocation17], %s439
        %v442 = vld [vmem:[%s376] sm:$0xff]
        %v443 = vpack.c.bf16 %v442, %v442
        %v444 = vld [vmem:[%s385] sm:$0xff]
        %v445 = vpack.c.bf16 %v444, %v444
        %v446 = vld [vmem:[#allocation11] sm:$0xf]
        %v447 = vld [vmem:[#allocation11 + $0x4] sm:$0xf]
        %v448 = vld [vmem:[#allocation11 + $0x8] sm:$0xf]
        %v449 = vld [vmem:[#allocation11 + $0xc] sm:$0xf]
        %v450 = vld [vmem:[#allocation12] sm:$0x1]
        %v452 = vlaneseq
        %v453 = vshrl.u32 %v452, 7
        %v454 = vsub.s32 0, %v453
        %v455 = vrot.slane %v450, %v454
        %v461 = vunpack.c.l.b16 %v446
        %v462 = vunpack.c.l.b16 %v447
        %v463 = vunpack.c.l.b16 %v448
        %v464 = vunpack.c.l.b16 %v449
        %v465 = vpack.c.b16 %v462, %v461
        %v466 = vpack.c.b16 %v464, %v463
        %vm469 = vcmask 261120
        %v471 = vsel %vm469, %v443, 0
        %473 = vmatprep.subr.bf16.mxu0 0
        %474 = vmatpush1.bf16.msra.mxu0 %v465
        %475 = vmatprep.subr.bf16.mxu0 0
        %476 = vmatpush1.bf16.msra.mxu0 %v466
        %477 = vmatprep.subr.bf16.mxu0 0
        %478 = vmatpush1.bf16.msra.mxu0 0
        %479 = vmatprep.subr.bf16.mxu0 0
        %480 = vmatpush1.bf16.msra.mxu0 0
        %481 = vmatprep.subr.bf16.mxu0 0
        %482 = vmatpush1.bf16.msra.mxu0 0
        %483 = vmatprep.subr.bf16.mxu0 0
        %484 = vmatpush1.bf16.msra.mxu0 0
        %485 = vmatprep.subr.bf16.mxu0 0
        %486 = vmatpush1.bf16.msra.mxu0 0
        %487 = vmatprep.subr.bf16.mxu0 0
        %488 = vmatpush1.bf16.msra.mxu0 0
        %489 = vmatprep.subr.bf16.mxu0 0
        %490 = vmatpush1.bf16.msra.mxu0 0
        %491 = vmatprep.subr.bf16.mxu0 0
        %492 = vmatpush1.bf16.msra.mxu0 0
        %493 = vmatprep.subr.bf16.mxu0 0
        %494 = vmatpush1.bf16.msra.mxu0 0
        %495 = vmatprep.subr.bf16.mxu0 0
        %496 = vmatpush1.bf16.msra.mxu0 0
        %497 = vmatprep.subr.bf16.mxu0 0
        %498 = vmatpush1.bf16.msra.mxu0 0
        %499 = vmatprep.subr.bf16.mxu0 0
        %500 = vmatpush1.bf16.msra.mxu0 0
        %501 = vmatprep.subr.bf16.mxu0 0
        %502 = vmatpush1.bf16.msra.mxu0 0
        %503 = vmatprep.subr.bf16.mxu0 0
        %504 = vmatpush1.bf16.msra.mxu0 0
        %505 = vmatprep.mubr.bf16.mxu0 0
        %506 = vmatmul.mubr.bf16.gmra.mrb[0].mxu0 %v471
        %v507 = vpop.f32.mrb[0].mxu0
        %v508 = vadd.f32 %v455, %v507
        %v509 = vpop.f32.mrb[0].mxu0
        %v510 = vpop.f32.mrb[0].mxu0
        %v511 = vpop.f32.mrb[0].mxu0
        %512 = vdwg.mxu0
        %v513 = vld [vmem:[%s5] sm:$0xf]
        %v514 = vld [vmem:[%s5 + $0x4] sm:$0xf]
        %v515 = vld [vmem:[%s5 + $0x8] sm:$0xf]
        %v516 = vld [vmem:[%s5 + $0xc] sm:$0xf]
        %v521 = vunpack.c.l.b16 %v513
        %v522 = vunpack.c.l.b16 %v514
        %v523 = vunpack.c.l.b16 %v515
        %v524 = vunpack.c.l.b16 %v516
        %v525 = vpack.c.b16 %v522, %v521
        %v526 = vpack.c.b16 %v524, %v523
        %v530 = vsel %vm469, %v445, 0
        %532 = vmatprep.subr.bf16.mxu0 0
        %533 = vmatpush1.bf16.msra.mxu0 %v525
        %534 = vmatprep.subr.bf16.mxu0 0
        %535 = vmatpush1.bf16.msra.mxu0 %v526
        %536 = vmatprep.subr.bf16.mxu0 0
        %537 = vmatpush1.bf16.msra.mxu0 0
        %538 = vmatprep.subr.bf16.mxu0 0
        %539 = vmatpush1.bf16.msra.mxu0 0
        %540 = vmatprep.subr.bf16.mxu0 0
        %541 = vmatpush1.bf16.msra.mxu0 0
        %542 = vmatprep.subr.bf16.mxu0 0
        %543 = vmatpush1.bf16.msra.mxu0 0
        %544 = vmatprep.subr.bf16.mxu0 0
        %545 = vmatpush1.bf16.msra.mxu0 0
        %546 = vmatprep.subr.bf16.mxu0 0
        %547 = vmatpush1.bf16.msra.mxu0 0
        %548 = vmatprep.subr.bf16.mxu0 0
        %549 = vmatpush1.bf16.msra.mxu0 0
        %550 = vmatprep.subr.bf16.mxu0 0
        %551 = vmatpush1.bf16.msra.mxu0 0
        %552 = vmatprep.subr.bf16.mxu0 0
        %553 = vmatpush1.bf16.msra.mxu0 0
        %554 = vmatprep.subr.bf16.mxu0 0
        %555 = vmatpush1.bf16.msra.mxu0 0
        %556 = vmatprep.subr.bf16.mxu0 0
        %557 = vmatpush1.bf16.msra.mxu0 0
        %558 = vmatprep.subr.bf16.mxu0 0
        %559 = vmatpush1.bf16.msra.mxu0 0
        %560 = vmatprep.subr.bf16.mxu0 0
        %561 = vmatpush1.bf16.msra.mxu0 0
        %562 = vmatprep.subr.bf16.mxu0 0
        %563 = vmatpush1.bf16.msra.mxu0 0
        %564 = vmatprep.mubr.bf16.mxu0 0
        %565 = vmatmul.mubr.bf16.gmra.mrb[0].mxu0 %v530
        %v566 = vpop.f32.mrb[0].mxu0
        %v567 = vadd.f32 0.0, %v566
        %v568 = vpop.f32.mrb[0].mxu0
        %v569 = vpop.f32.mrb[0].mxu0
        %v570 = vpop.f32.mrb[0].mxu0
        %571 = vdwg.mxu0
        %v572 = vld [vmem:[#allocation14] sm:$0xf]
        %v573 = vld [vmem:[#allocation14 + $0x4] sm:$0xf]
        %v574 = vld [vmem:[#allocation14 + $0x8] sm:$0xf]
        %v575 = vld [vmem:[#allocation14 + $0xc] sm:$0xf]
        %v580 = vunpack.c.l.b16 %v572
        %v581 = vunpack.c.l.b16 %v573
        %v582 = vunpack.c.l.b16 %v574
        %v583 = vunpack.c.l.b16 %v575
        %v584 = vpack.c.b16 %v581, %v580
        %v585 = vpack.c.b16 %v583, %v582
        %588 = vmatprep.subr.bf16.mxu0 0
        %589 = vmatpush1.bf16.msra.mxu0 %v584
        %590 = vmatprep.subr.bf16.mxu0 0
        %591 = vmatpush1.bf16.msra.mxu0 %v585
        %592 = vmatprep.subr.bf16.mxu0 0
        %593 = vmatpush1.bf16.msra.mxu0 0
        %594 = vmatprep.subr.bf16.mxu0 0
        %595 = vmatpush1.bf16.msra.mxu0 0
        %596 = vmatprep.subr.bf16.mxu0 0
        %597 = vmatpush1.bf16.msra.mxu0 0
        %598 = vmatprep.subr.bf16.mxu0 0
        %599 = vmatpush1.bf16.msra.mxu0 0
        %600 = vmatprep.subr.bf16.mxu0 0
        %601 = vmatpush1.bf16.msra.mxu0 0
        %602 = vmatprep.subr.bf16.mxu0 0
        %603 = vmatpush1.bf16.msra.mxu0 0
        %604 = vmatprep.subr.bf16.mxu0 0
        %605 = vmatpush1.bf16.msra.mxu0 0
        %606 = vmatprep.subr.bf16.mxu0 0
        %607 = vmatpush1.bf16.msra.mxu0 0
        %608 = vmatprep.subr.bf16.mxu0 0
        %609 = vmatpush1.bf16.msra.mxu0 0
        %610 = vmatprep.subr.bf16.mxu0 0
        %611 = vmatpush1.bf16.msra.mxu0 0
        %612 = vmatprep.subr.bf16.mxu0 0
        %613 = vmatpush1.bf16.msra.mxu0 0
        %614 = vmatprep.subr.bf16.mxu0 0
        %615 = vmatpush1.bf16.msra.mxu0 0
        %616 = vmatprep.subr.bf16.mxu0 0
        %617 = vmatpush1.bf16.msra.mxu0 0
        %618 = vmatprep.subr.bf16.mxu0 0
        %619 = vmatpush1.bf16.msra.mxu0 0
        %620 = vmatprep.mubr.bf16.mxu0 0
        %621 = vmatmul.mubr.bf16.gmra.mrb[0].mxu0 %v530
        %v622 = vpop.f32.mrb[0].mxu0
        %v623 = vadd.f32 0.0, %v622
        %v624 = vpop.f32.mrb[0].mxu0
        %v625 = vpop.f32.mrb[0].mxu0
        %v626 = vpop.f32.mrb[0].mxu0
        %627 = vdwg.mxu0
        %v628 = vpack.c.bf16 %v508, %v508
        %vm629 = vcmask 257024
        %630 = vst.msk [vmem:[#allocation2] sm:$0xf] %vm629, %v628
        %v631 = vpack.c.bf16 %v567, %v567
        %632 = vst.msk [vmem:[#allocation3] sm:$0xf] %vm629, %v631
        %v633 = vpack.c.bf16 %v623, %v623
        %634 = vst.msk [vmem:[#allocation4] sm:$0xf] %vm629, %v633
        %s635 = scalar_lea.vmem %s2, %s31
        %v636 = vld [vmem:[%s635] sm:$0x1]
        %v637 = vsub.f32 1.0, %v636
        %v638 = vlaneseq
        %v639 = vshrl.u32 %v638, 7
        %v640 = vsub.s32 0, %v639
        %v641 = vrot.slane %v637, %v640
        %vm642 = vcmp.ne.f32.partialorder %v641, 0.0
        %v643 = vld [vmem:[#allocation2] sm:$0xf]
        %v644 = vld [vmem:[#allocation3] sm:$0xf]
        %v645 = vld [vmem:[#allocation4] sm:$0xf]
        %vm646 = vcmask 64512
        %v648 = vsel %vm646, %v643, 0
        %v651 = vsel %vm646, %v644, 0
        %653 = vmatprep.subr.bf16.mxu0 0
        %654 = vmatpush1.bf16.xpose.msra.mxu0 %v651
        %655 = vmatprep.subr.bf16.mxu0 0
        %656 = vmatpush1.bf16.xpose.msra.mxu0 0
        %657 = vmatprep.subr.bf16.mxu0 0
        %658 = vmatpush1.bf16.xpose.msra.mxu0 0
        %659 = vmatprep.subr.bf16.mxu0 0
        %660 = vmatpush1.bf16.xpose.msra.mxu0 0
        %661 = vmatprep.subr.bf16.mxu0 0
        %662 = vmatpush1.bf16.xpose.msra.mxu0 0
        %663 = vmatprep.subr.bf16.mxu0 0
        %664 = vmatpush1.bf16.xpose.msra.mxu0 0
        %665 = vmatprep.subr.bf16.mxu0 0
        %666 = vmatpush1.bf16.xpose.msra.mxu0 0
        %667 = vmatprep.subr.bf16.mxu0 0
        %668 = vmatpush1.bf16.xpose.msra.mxu0 0
        %669 = vmatprep.subr.bf16.mxu0 0
        %670 = vmatpush1.bf16.xpose.msra.mxu0 0
        %671 = vmatprep.subr.bf16.mxu0 0
        %672 = vmatpush1.bf16.xpose.msra.mxu0 0
        %673 = vmatprep.subr.bf16.mxu0 0
        %674 = vmatpush1.bf16.xpose.msra.mxu0 0
        %675 = vmatprep.subr.bf16.mxu0 0
        %676 = vmatpush1.bf16.xpose.msra.mxu0 0
        %677 = vmatprep.subr.bf16.mxu0 0
        %678 = vmatpush1.bf16.xpose.msra.mxu0 0
        %679 = vmatprep.subr.bf16.mxu0 0
        %680 = vmatpush1.bf16.xpose.msra.mxu0 0
        %681 = vmatprep.subr.bf16.mxu0 0
        %682 = vmatpush1.bf16.xpose.msra.mxu0 0
        %683 = vmatprep.subr.bf16.mxu0 0
        %684 = vmatpush1.bf16.xpose.msra.mxu0 0
        %685 = vmatprep.mubr.bf16.mxu0 0
        %686 = vmatmul.mubr.bf16.gmra.mrb[0].mxu0 %v648
        %v687 = vpop.f32.mrb[0].mxu0
        %v688 = vadd.f32 0.0, %v687
        %v689 = vpop.f32.mrb[0].mxu0
        %v690 = vpop.f32.mrb[0].mxu0
        %v691 = vpop.f32.mrb[0].mxu0
        %692 = vdwg.mxu0
        %v693 = vsel %vm642, 1e-10, %v688
        %v694 = vsel %vm646, %v693, -inf
        %695 = vmax.xlane.f32.xlu0 %v694
        %v696 = vpop.xlane.xlu0 %695
        %v697 = vsub.f32 %v693, %v696
        %v698 = vmul.f32 %v697, 1.442695
        %v699 = vpow.pop %v698
        %v700 = vsel %vm646, %v699, 0.0
        %701 = vadd.xlane.f32.xlu0 %v700
        %v702 = vpop.xlane.xlu0 %701
        %v703 = vrcp.pop %v702
        %v704 = vmul.f32 %v699, %v703
        %v705 = vpack.c.bf16 %v704, %v704
        %v707 = vsel %vm646, %v705, 0
        %vm709 = vcmask 1043456
        %v711 = vsel %vm709, %v645, 0
        %713 = vmatprep.subr.bf16.mxu0 0
        %714 = vmatpush1.bf16.msra.mxu0 %v711
        %715 = vmatprep.subr.bf16.mxu0 0
        %716 = vmatpush1.bf16.msra.mxu0 0
        %717 = vmatprep.subr.bf16.mxu0 0
        %718 = vmatpush1.bf16.msra.mxu0 0
        %719 = vmatprep.subr.bf16.mxu0 0
        %720 = vmatpush1.bf16.msra.mxu0 0
        %721 = vmatprep.subr.bf16.mxu0 0
        %722 = vmatpush1.bf16.msra.mxu0 0
        %723 = vmatprep.subr.bf16.mxu0 0
        %724 = vmatpush1.bf16.msra.mxu0 0
        %725 = vmatprep.subr.bf16.mxu0 0
        %726 = vmatpush1.bf16.msra.mxu0 0
        %727 = vmatprep.subr.bf16.mxu0 0
        %728 = vmatpush1.bf16.msra.mxu0 0
        %729 = vmatprep.subr.bf16.mxu0 0
        %730 = vmatpush1.bf16.msra.mxu0 0
        %731 = vmatprep.subr.bf16.mxu0 0
        %732 = vmatpush1.bf16.msra.mxu0 0
        %733 = vmatprep.subr.bf16.mxu0 0
        %734 = vmatpush1.bf16.msra.mxu0 0
        %735 = vmatprep.subr.bf16.mxu0 0
        %736 = vmatpush1.bf16.msra.mxu0 0
        %737 = vmatprep.subr.bf16.mxu0 0
        %738 = vmatpush1.bf16.msra.mxu0 0
        %739 = vmatprep.subr.bf16.mxu0 0
        %740 = vmatpush1.bf16.msra.mxu0 0
        %741 = vmatprep.subr.bf16.mxu0 0
        %742 = vmatpush1.bf16.msra.mxu0 0
        %743 = vmatprep.subr.bf16.mxu0 0
        %744 = vmatpush1.bf16.msra.mxu0 0
        %745 = vmatprep.mubr.bf16.mxu0 0
        %746 = vmatmul.mubr.bf16.gmra.mrb[0].mxu0 %v707
        %v747 = vpop.f32.mrb[0].mxu0
        %v748 = vadd.f32 0.0, %v747
        %v749 = vpop.f32.mrb[0].mxu0
        %v750 = vpop.f32.mrb[0].mxu0
        %v751 = vpop.f32.mrb[0].mxu0
        %752 = vdwg.mxu0
        %v753 = vpack.c.bf16 %v748, %v748
        %vm754 = vcmask 60416
        %755 = vst.msk [vmem:[#allocation5] sm:$0xf] %vm754, %v753
        %v756 = vld [vmem:[#allocation2] sm:$0xf]
        %v757 = vld [vmem:[#allocation3] sm:$0xf]
        %v758 = vld [vmem:[#allocation4] sm:$0xf]
        %v760 = vunpack.c.l.b16 %v756
        %v761 = vpack.c.b16 %v760, %v760
        %762 = vrot.lane.b32.xlu0 %v761, 120
        %v763 = vpop.permute.xlu0 %762
        %v765 = vunpack.c.l.b16 %v757
        %v766 = vpack.c.b16 %v765, %v765
        %767 = vrot.lane.b32.xlu0 %v766, 120
        %v768 = vpop.permute.xlu0 %767
        %v770 = vsel %vm646, %v763, 0
        %v773 = vsel %vm646, %v768, 0
        %775 = vmatprep.subr.bf16.mxu0 0
        %776 = vmatpush1.bf16.xpose.msra.mxu0 %v773
        %777 = vmatprep.subr.bf16.mxu0 0
        %778 = vmatpush1.bf16.xpose.msra.mxu0 0
        %779 = vmatprep.subr.bf16.mxu0 0
        %780 = vmatpush1.bf16.xpose.msra.mxu0 0
        %781 = vmatprep.subr.bf16.mxu0 0
        %782 = vmatpush1.bf16.xpose.msra.mxu0 0
        %783 = vmatprep.subr.bf16.mxu0 0
        %784 = vmatpush1.bf16.xpose.msra.mxu0 0
        %785 = vmatprep.subr.bf16.mxu0 0
        %786 = vmatpush1.bf16.xpose.msra.mxu0 0
        %787 = vmatprep.subr.bf16.mxu0 0
        %788 = vmatpush1.bf16.xpose.msra.mxu0 0
        %789 = vmatprep.subr.bf16.mxu0 0
        %790 = vmatpush1.bf16.xpose.msra.mxu0 0
        %791 = vmatprep.subr.bf16.mxu0 0
        %792 = vmatpush1.bf16.xpose.msra.mxu0 0
        %793 = vmatprep.subr.bf16.mxu0 0
        %794 = vmatpush1.bf16.xpose.msra.mxu0 0
        %795 = vmatprep.subr.bf16.mxu0 0
        %796 = vmatpush1.bf16.xpose.msra.mxu0 0
        %797 = vmatprep.subr.bf16.mxu0 0
        %798 = vmatpush1.bf16.xpose.msra.mxu0 0
        %799 = vmatprep.subr.bf16.mxu0 0
        %800 = vmatpush1.bf16.xpose.msra.mxu0 0
        %801 = vmatprep.subr.bf16.mxu0 0
        %802 = vmatpush1.bf16.xpose.msra.mxu0 0
        %803 = vmatprep.subr.bf16.mxu0 0
        %804 = vmatpush1.bf16.xpose.msra.mxu0 0
        %805 = vmatprep.subr.bf16.mxu0 0
        %806 = vmatpush1.bf16.xpose.msra.mxu0 0
        %807 = vmatprep.mubr.bf16.mxu0 0
        %808 = vmatmul.mubr.bf16.gmra.mrb[0].mxu0 %v770
        %v809 = vpop.f32.mrb[0].mxu0
        %v810 = vadd.f32 0.0, %v809
        %v811 = vpop.f32.mrb[0].mxu0
        %v812 = vpop.f32.mrb[0].mxu0
        %v813 = vpop.f32.mrb[0].mxu0
        %814 = vdwg.mxu0
        %v815 = vsel %vm642, 1e-10, %v810
        %v816 = vsel %vm646, %v815, -inf
        %817 = vmax.xlane.f32.xlu0 %v816
        %v818 = vpop.xlane.xlu0 %817
        %v819 = vsub.f32 %v815, %v818
        %v820 = vmul.f32 %v819, 1.442695
        %v821 = vpow.pop %v820
        %v822 = vsel %vm646, %v821, 0.0
        %823 = vadd.xlane.f32.xlu0 %v822
        %v824 = vpop.xlane.xlu0 %823
        %v825 = vrcp.pop %v824
        %v826 = vmul.f32 %v821, %v825
        %v827 = vpack.c.bf16 %v826, %v826
        %v829 = vunpack.c.l.b16 %v758
        %v830 = vpack.c.b16 %v829, %v829
        %831 = vrot.lane.b32.xlu0 %v830, 120
        %v832 = vpop.permute.xlu0 %831
        %v834 = vsel %vm646, %v827, 0
        %v837 = vsel %vm709, %v832, 0
        %839 = vmatprep.subr.bf16.mxu0 0
        %840 = vmatpush1.bf16.msra.mxu0 %v837
        %841 = vmatprep.subr.bf16.mxu0 0
        %842 = vmatpush1.bf16.msra.mxu0 0
        %843 = vmatprep.subr.bf16.mxu0 0
        %844 = vmatpush1.bf16.msra.mxu0 0
        %845 = vmatprep.subr.bf16.mxu0 0
        %846 = vmatpush1.bf16.msra.mxu0 0
        %847 = vmatprep.subr.bf16.mxu0 0
        %848 = vmatpush1.bf16.msra.mxu0 0
        %849 = vmatprep.subr.bf16.mxu0 0
        %850 = vmatpush1.bf16.msra.mxu0 0
        %851 = vmatprep.subr.bf16.mxu0 0
        %852 = vmatpush1.bf16.msra.mxu0 0
        %853 = vmatprep.subr.bf16.mxu0 0
        %854 = vmatpush1.bf16.msra.mxu0 0
        %855 = vmatprep.subr.bf16.mxu0 0
        %856 = vmatpush1.bf16.msra.mxu0 0
        %857 = vmatprep.subr.bf16.mxu0 0
        %858 = vmatpush1.bf16.msra.mxu0 0
        %859 = vmatprep.subr.bf16.mxu0 0
        %860 = vmatpush1.bf16.msra.mxu0 0
        %861 = vmatprep.subr.bf16.mxu0 0
        %862 = vmatpush1.bf16.msra.mxu0 0
        %863 = vmatprep.subr.bf16.mxu0 0
        %864 = vmatpush1.bf16.msra.mxu0 0
        %865 = vmatprep.subr.bf16.mxu0 0
        %866 = vmatpush1.bf16.msra.mxu0 0
        %867 = vmatprep.subr.bf16.mxu0 0
        %868 = vmatpush1.bf16.msra.mxu0 0
        %869 = vmatprep.subr.bf16.mxu0 0
        %870 = vmatpush1.bf16.msra.mxu0 0
        %871 = vmatprep.mubr.bf16.mxu0 0
        %872 = vmatmul.mubr.bf16.gmra.mrb[0].mxu0 %v834
        %v873 = vpop.f32.mrb[0].mxu0
        %v874 = vadd.f32 0.0, %v873
        %v875 = vpop.f32.mrb[0].mxu0
        %v876 = vpop.f32.mrb[0].mxu0
        %v877 = vpop.f32.mrb[0].mxu0
        %878 = vdwg.mxu0
        %v879 = vpack.c.bf16 %v874, %v874
        %v881 = vunpack.c.l.b16 %v879
        %v882 = vpack.c.b16 %v881, %v881
        %883 = vrot.lane.b32.xlu0 %v882, 8
        %v884 = vpop.permute.xlu0 %883
        %vm886 = vcmask 126016
        %887 = vst.msk [vmem:[#allocation5] sm:$0xf] %vm886, %v884
        %v888 = vld [vmem:[#allocation2] sm:$0xf]
        %v889 = vld [vmem:[#allocation3] sm:$0xf]
        %v890 = vld [vmem:[#allocation4] sm:$0xf]
        %v892 = vunpack.c.l.b16 %v888
        %v893 = vpack.c.b16 %v892, %v892
        %894 = vrot.lane.b32.xlu0 %v893, 112
        %v895 = vpop.permute.xlu0 %894
        %v897 = vunpack.c.l.b16 %v889
        %v898 = vpack.c.b16 %v897, %v897
        %899 = vrot.lane.b32.xlu0 %v898, 112
        %v900 = vpop.permute.xlu0 %899
        %v902 = vsel %vm646, %v895, 0
        %v905 = vsel %vm646, %v900, 0
        %907 = vmatprep.subr.bf16.mxu0 0
        %908 = vmatpush1.bf16.xpose.msra.mxu0 %v905
        %909 = vmatprep.subr.bf16.mxu0 0
        %910 = vmatpush1.bf16.xpose.msra.mxu0 0
        %911 = vmatprep.subr.bf16.mxu0 0
        %912 = vmatpush1.bf16.xpose.msra.mxu0 0
        %913 = vmatprep.subr.bf16.mxu0 0
        %914 = vmatpush1.bf16.xpose.msra.mxu0 0
        %915 = vmatprep.subr.bf16.mxu0 0
        %916 = vmatpush1.bf16.xpose.msra.mxu0 0
        %917 = vmatprep.subr.bf16.mxu0 0
        %918 = vmatpush1.bf16.xpose.msra.mxu0 0
        %919 = vmatprep.subr.bf16.mxu0 0
        %920 = vmatpush1.bf16.xpose.msra.mxu0 0
        %921 = vmatprep.subr.bf16.mxu0 0
        %922 = vmatpush1.bf16.xpose.msra.mxu0 0
        %923 = vmatprep.subr.bf16.mxu0 0
        %924 = vmatpush1.bf16.xpose.msra.mxu0 0
        %925 = vmatprep.subr.bf16.mxu0 0
        %926 = vmatpush1.bf16.xpose.msra.mxu0 0
        %927 = vmatprep.subr.bf16.mxu0 0
        %928 = vmatpush1.bf16.xpose.msra.mxu0 0
        %929 = vmatprep.subr.bf16.mxu0 0
        %930 = vmatpush1.bf16.xpose.msra.mxu0 0
        %931 = vmatprep.subr.bf16.mxu0 0
        %932 = vmatpush1.bf16.xpose.msra.mxu0 0
        %933 = vmatprep.subr.bf16.mxu0 0
        %934 = vmatpush1.bf16.xpose.msra.mxu0 0
        %935 = vmatprep.subr.bf16.mxu0 0
        %936 = vmatpush1.bf16.xpose.msra.mxu0 0
        %937 = vmatprep.subr.bf16.mxu0 0
        %938 = vmatpush1.bf16.xpose.msra.mxu0 0
        %939 = vmatprep.mubr.bf16.mxu0 0
        %940 = vmatmul.mubr.bf16.gmra.mrb[0].mxu0 %v902
        %v941 = vpop.f32.mrb[0].mxu0
        %v942 = vadd.f32 0.0, %v941
        %v943 = vpop.f32.mrb[0].mxu0
        %v944 = vpop.f32.mrb[0].mxu0
        %v945 = vpop.f32.mrb[0].mxu0
        %946 = vdwg.mxu0
        %v947 = vsel %vm642, 1e-10, %v942
        %v948 = vsel %vm646, %v947, -inf
        %949 = vmax.xlane.f32.xlu0 %v948
        %v950 = vpop.xlane.xlu0 %949
        %v951 = vsub.f32 %v947, %v950
        %v952 = vmul.f32 %v951, 1.442695
        %v953 = vpow.pop %v952
        %v954 = vsel %vm646, %v953, 0.0
        %955 = vadd.xlane.f32.xlu0 %v954
        %v956 = vpop.xlane.xlu0 %955
        %v957 = vrcp.pop %v956
        %v958 = vmul.f32 %v953, %v957
        %v959 = vpack.c.bf16 %v958, %v958
        %v961 = vunpack.c.l.b16 %v890
        %v962 = vpack.c.b16 %v961, %v961
        %963 = vrot.lane.b32.xlu0 %v962, 112
        %v964 = vpop.permute.xlu0 %963
        %v966 = vsel %vm646, %v959, 0
        %v969 = vsel %vm709, %v964, 0
        %971 = vmatprep.subr.bf16.mxu0 0
        %972 = vmatpush1.bf16.msra.mxu0 %v969
        %973 = vmatprep.subr.bf16.mxu0 0
        %974 = vmatpush1.bf16.msra.mxu0 0
        %975 = vmatprep.subr.bf16.mxu0 0
        %976 = vmatpush1.bf16.msra.mxu0 0
        %977 = vmatprep.subr.bf16.mxu0 0
        %978 = vmatpush1.bf16.msra.mxu0 0
        %979 = vmatprep.subr.bf16.mxu0 0
        %980 = vmatpush1.bf16.msra.mxu0 0
        %981 = vmatprep.subr.bf16.mxu0 0
        %982 = vmatpush1.bf16.msra.mxu0 0
        %983 = vmatprep.subr.bf16.mxu0 0
        %984 = vmatpush1.bf16.msra.mxu0 0
        %985 = vmatprep.subr.bf16.mxu0 0
        %986 = vmatpush1.bf16.msra.mxu0 0
        %987 = vmatprep.subr.bf16.mxu0 0
        %988 = vmatpush1.bf16.msra.mxu0 0
        %989 = vmatprep.subr.bf16.mxu0 0
        %990 = vmatpush1.bf16.msra.mxu0 0
        %991 = vmatprep.subr.bf16.mxu0 0
        %992 = vmatpush1.bf16.msra.mxu0 0
        %993 = vmatprep.subr.bf16.mxu0 0
        %994 = vmatpush1.bf16.msra.mxu0 0
        %995 = vmatprep.subr.bf16.mxu0 0
        %996 = vmatpush1.bf16.msra.mxu0 0
        %997 = vmatprep.subr.bf16.mxu0 0
        %998 = vmatpush1.bf16.msra.mxu0 0
        %999 = vmatprep.subr.bf16.mxu0 0
        %1000 = vmatpush1.bf16.msra.mxu0 0
        %1001 = vmatprep.subr.bf16.mxu0 0
        %1002 = vmatpush1.bf16.msra.mxu0 0
        %1003 = vmatprep.mubr.bf16.mxu0 0
        %1004 = vmatmul.mubr.bf16.gmra.mrb[0].mxu0 %v966
        %v1005 = vpop.f32.mrb[0].mxu0
        %v1006 = vadd.f32 0.0, %v1005
        %v1007 = vpop.f32.mrb[0].mxu0
        %v1008 = vpop.f32.mrb[0].mxu0
        %v1009 = vpop.f32.mrb[0].mxu0
        %1010 = vdwg.mxu0
        %v1011 = vpack.c.bf16 %v1006, %v1006
        %v1013 = vunpack.c.l.b16 %v1011
        %v1014 = vpack.c.b16 %v1013, %v1013
        %1015 = vrot.lane.b32.xlu0 %v1014, 16
        %v1016 = vpop.permute.xlu0 %1015
        %vm1018 = vcmask 191616
        %1019 = vst.msk [vmem:[#allocation5] sm:$0xf] %vm1018, %v1016
        %v1020 = vld [vmem:[#allocation2] sm:$0xf]
        %v1021 = vld [vmem:[#allocation3] sm:$0xf]
        %v1022 = vld [vmem:[#allocation4] sm:$0xf]
        %v1024 = vunpack.c.l.b16 %v1020
        %v1025 = vpack.c.b16 %v1024, %v1024
        %1026 = vrot.lane.b32.xlu0 %v1025, 104
        %v1027 = vpop.permute.xlu0 %1026
        %v1029 = vunpack.c.l.b16 %v1021
        %v1030 = vpack.c.b16 %v1029, %v1029
        %1031 = vrot.lane.b32.xlu0 %v1030, 104
        %v1032 = vpop.permute.xlu0 %1031
        %v1034 = vsel %vm646, %v1027, 0
        %v1037 = vsel %vm646, %v1032, 0
        %1039 = vmatprep.subr.bf16.mxu0 0
        %1040 = vmatpush1.bf16.xpose.msra.mxu0 %v1037
        %1041 = vmatprep.subr.bf16.mxu0 0
        %1042 = vmatpush1.bf16.xpose.msra.mxu0 0
        %1043 = vmatprep.subr.bf16.mxu0 0
        %1044 = vmatpush1.bf16.xpose.msra.mxu0 0
        %1045 = vmatprep.subr.bf16.mxu0 0
        %1046 = vmatpush1.bf16.xpose.msra.mxu0 0
        %1047 = vmatprep.subr.bf16.mxu0 0
        %1048 = vmatpush1.bf16.xpose.msra.mxu0 0
        %1049 = vmatprep.subr.bf16.mxu0 0
        %1050 = vmatpush1.bf16.xpose.msra.mxu0 0
        %1051 = vmatprep.subr.bf16.mxu0 0
        %1052 = vmatpush1.bf16.xpose.msra.mxu0 0
        %1053 = vmatprep.subr.bf16.mxu0 0
        %1054 = vmatpush1.bf16.xpose.msra.mxu0 0
        %1055 = vmatprep.subr.bf16.mxu0 0
        %1056 = vmatpush1.bf16.xpose.msra.mxu0 0
        %1057 = vmatprep.subr.bf16.mxu0 0
        %1058 = vmatpush1.bf16.xpose.msra.mxu0 0
        %1059 = vmatprep.subr.bf16.mxu0 0
        %1060 = vmatpush1.bf16.xpose.msra.mxu0 0
        %1061 = vmatprep.subr.bf16.mxu0 0
        %1062 = vmatpush1.bf16.xpose.msra.mxu0 0
        %1063 = vmatprep.subr.bf16.mxu0 0
        %1064 = vmatpush1.bf16.xpose.msra.mxu0 0
        %1065 = vmatprep.subr.bf16.mxu0 0
        %1066 = vmatpush1.bf16.xpose.msra.mxu0 0
        %1067 = vmatprep.subr.bf16.mxu0 0
        %1068 = vmatpush1.bf16.xpose.msra.mxu0 0
        %1069 = vmatprep.subr.bf16.mxu0 0
        %1070 = vmatpush1.bf16.xpose.msra.mxu0 0
        %1071 = vmatprep.mubr.bf16.mxu0 0
        %1072 = vmatmul.mubr.bf16.gmra.mrb[0].mxu0 %v1034
        %v1073 = vpop.f32.mrb[0].mxu0
        %v1074 = vadd.f32 0.0, %v1073
        %v1075 = vpop.f32.mrb[0].mxu0
        %v1076 = vpop.f32.mrb[0].mxu0
        %v1077 = vpop.f32.mrb[0].mxu0
        %1078 = vdwg.mxu0
        %v1079 = vsel %vm642, 1e-10, %v1074
        %v1080 = vsel %vm646, %v1079, -inf
        %1081 = vmax.xlane.f32.xlu0 %v1080
        %v1082 = vpop.xlane.xlu0 %1081
        %v1083 = vsub.f32 %v1079, %v1082
        %v1084 = vmul.f32 %v1083, 1.442695
        %v1085 = vpow.pop %v1084
        %v1086 = vsel %vm646, %v1085, 0.0
        %1087 = vadd.xlane.f32.xlu0 %v1086
        %v1088 = vpop.xlane.xlu0 %1087
        %v1089 = vrcp.pop %v1088
        %v1090 = vmul.f32 %v1085, %v1089
        %v1091 = vpack.c.bf16 %v1090, %v1090
        %v1093 = vunpack.c.l.b16 %v1022
        %v1094 = vpack.c.b16 %v1093, %v1093
        %1095 = vrot.lane.b32.xlu0 %v1094, 104
        %v1096 = vpop.permute.xlu0 %1095
        %v1098 = vsel %vm646, %v1091, 0
        %v1101 = vsel %vm709, %v1096, 0
        %1103 = vmatprep.subr.bf16.mxu0 0
        %1104 = vmatpush1.bf16.msra.mxu0 %v1101
        %1105 = vmatprep.subr.bf16.mxu0 0
        %1106 = vmatpush1.bf16.msra.mxu0 0
        %1107 = vmatprep.subr.bf16.mxu0 0
        %1108 = vmatpush1.bf16.msra.mxu0 0
        %1109 = vmatprep.subr.bf16.mxu0 0
        %1110 = vmatpush1.bf16.msra.mxu0 0
        %1111 = vmatprep.subr.bf16.mxu0 0
        %1112 = vmatpush1.bf16.msra.mxu0 0
        %1113 = vmatprep.subr.bf16.mxu0 0
        %1114 = vmatpush1.bf16.msra.mxu0 0
        %1115 = vmatprep.subr.bf16.mxu0 0
        %1116 = vmatpush1.bf16.msra.mxu0 0
        %1117 = vmatprep.subr.bf16.mxu0 0
        %1118 = vmatpush1.bf16.msra.mxu0 0
        %1119 = vmatprep.subr.bf16.mxu0 0
        %1120 = vmatpush1.bf16.msra.mxu0 0
        %1121 = vmatprep.subr.bf16.mxu0 0
        %1122 = vmatpush1.bf16.msra.mxu0 0
        %1123 = vmatprep.subr.bf16.mxu0 0
        %1124 = vmatpush1.bf16.msra.mxu0 0
        %1125 = vmatprep.subr.bf16.mxu0 0
        %1126 = vmatpush1.bf16.msra.mxu0 0
        %1127 = vmatprep.subr.bf16.mxu0 0
        %1128 = vmatpush1.bf16.msra.mxu0 0
        %1129 = vmatprep.subr.bf16.mxu0 0
        %1130 = vmatpush1.bf16.msra.mxu0 0
        %1131 = vmatprep.subr.bf16.mxu0 0
        %1132 = vmatpush1.bf16.msra.mxu0 0
        %1133 = vmatprep.subr.bf16.mxu0 0
        %1134 = vmatpush1.bf16.msra.mxu0 0
        %1135 = vmatprep.mubr.bf16.mxu0 0
        %1136 = vmatmul.mubr.bf16.gmra.mrb[0].mxu0 %v1098
        %v1137 = vpop.f32.mrb[0].mxu0
        %v1138 = vadd.f32 0.0, %v1137
        %v1139 = vpop.f32.mrb[0].mxu0
        %v1140 = vpop.f32.mrb[0].mxu0
        %v1141 = vpop.f32.mrb[0].mxu0
        %1142 = vdwg.mxu0
        %v1143 = vpack.c.bf16 %v1138, %v1138
        %v1145 = vunpack.c.l.b16 %v1143
        %v1146 = vpack.c.b16 %v1145, %v1145
        %1147 = vrot.lane.b32.xlu0 %v1146, 24
        %v1148 = vpop.permute.xlu0 %1147
        %vm1150 = vcmask 257216
        %1151 = vst.msk [vmem:[#allocation5] sm:$0xf] %vm1150, %v1148
        %v1152 = vld [vmem:[#allocation5] sm:$0xf]
        %v1153 = vld [vmem:[#allocation15] sm:$0xf]
        %v1154 = vld [vmem:[#allocation15 + $0x4] sm:$0xf]
        %v1155 = vld [vmem:[#allocation15 + $0x8] sm:$0xf]
        %v1156 = vld [vmem:[#allocation15 + $0xc] sm:$0xf]
        %v1157 = vld [vmem:[%s8] sm:$0x1]
        %v1159 = vlaneseq
        %v1160 = vshrl.u32 %v1159, 7
        %v1161 = vsub.s32 0, %v1160
        %v1162 = vrot.slane %v1157, %v1161
        %v1168 = vunpack.c.l.b16 %v1153
        %v1169 = vunpack.c.l.b16 %v1154
        %v1170 = vunpack.c.l.b16 %v1155
        %v1171 = vunpack.c.l.b16 %v1156
        %v1172 = vpack.c.b16 %v1169, %v1168
        %v1173 = vpack.c.b16 %v1171, %v1170
        %v1177 = vsel %vm469, %v1152, 0
        %1179 = vmatprep.subr.bf16.mxu0 0
        %1180 = vmatpush1.bf16.msra.mxu0 %v1172
        %1181 = vmatprep.subr.bf16.mxu0 0
        %1182 = vmatpush1.bf16.msra.mxu0 %v1173
        %1183 = vmatprep.subr.bf16.mxu0 0
        %1184 = vmatpush1.bf16.msra.mxu0 0
        %1185 = vmatprep.subr.bf16.mxu0 0
        %1186 = vmatpush1.bf16.msra.mxu0 0
        %1187 = vmatprep.subr.bf16.mxu0 0
        %1188 = vmatpush1.bf16.msra.mxu0 0
        %1189 = vmatprep.subr.bf16.mxu0 0
        %1190 = vmatpush1.bf16.msra.mxu0 0
        %1191 = vmatprep.subr.bf16.mxu0 0
        %1192 = vmatpush1.bf16.msra.mxu0 0
        %1193 = vmatprep.subr.bf16.mxu0 0
        %1194 = vmatpush1.bf16.msra.mxu0 0
        %1195 = vmatprep.subr.bf16.mxu0 0
        %1196 = vmatpush1.bf16.msra.mxu0 0
        %1197 = vmatprep.subr.bf16.mxu0 0
        %1198 = vmatpush1.bf16.msra.mxu0 0
        %1199 = vmatprep.subr.bf16.mxu0 0
        %1200 = vmatpush1.bf16.msra.mxu0 0
        %1201 = vmatprep.subr.bf16.mxu0 0
        %1202 = vmatpush1.bf16.msra.mxu0 0
        %1203 = vmatprep.subr.bf16.mxu0 0
        %1204 = vmatpush1.bf16.msra.mxu0 0
        %1205 = vmatprep.subr.bf16.mxu0 0
        %1206 = vmatpush1.bf16.msra.mxu0 0
        %1207 = vmatprep.subr.bf16.mxu0 0
        %1208 = vmatpush1.bf16.msra.mxu0 0
        %1209 = vmatprep.subr.bf16.mxu0 0
        %1210 = vmatpush1.bf16.msra.mxu0 0
        %1211 = vmatprep.mubr.bf16.mxu0 0
        %1212 = vmatmul.mubr.bf16.gmra.mrb[0].mxu0 %v1177
        %v1213 = vpop.f32.mrb[0].mxu0
        %v1214 = vadd.f32 %v1162, %v1213
        %v1215 = vpop.f32.mrb[0].mxu0
        %v1216 = vpop.f32.mrb[0].mxu0
        %v1217 = vpop.f32.mrb[0].mxu0
        %1218 = vdwg.mxu0
        %1219 = vst.msk [vmem:[%s440] sm:$0xff] %vm469, %v1214
        %s1220 = sand.u32 %s238, 1
        %s1221 = scalar_lea.sflag [#allocation8], %s1220
        %s1222 = sand.u32 %s238, 1
        %s1223 = smul.addr %s1222, 8
        %s1224 = scalar_lea.vmem [#allocation17], %s1223
        // Predicated region
        $region81: #{tpu_custom_call.1} parent=55 // pred_check
          %p1225 = pneg %p248
        $region82: #{tpu_custom_call.1} parent=55 // pred_check_branch
          %1227 = sbr.rel (%p1225) target = $region84
        $region83: #{tpu_custom_call.1} parent=55 // pred_region
          %s1229 = ssub.s32 128, 128
          %1230 = vsyncadd %s1221, %s1229
          %s1231 = smul.addr %s31, 128
          %s1232 = scalar_lea.hbm %s9, %s1231
          %s1234 = sshll.u32 %s1224, 4
          %s1235 = int_to_ptr.vmem [resolvable:$true] %s1234
          %1237 = dma.vmem_to_hbm [thread:$0]  %s1235, 128, %s1232, %s1221
        $region84: #{tpu_custom_call.1} parent=55 // pred_fallthru
          _
      $region56: #{tpu_custom_call.1} parent=5 // pred_fallthru
        _
      %p1238 = scmp.le.s32.totalorder 2, %s26
      // Predicated region
      $region85: #{tpu_custom_call.1} parent=5 // pred_check
        %p1239 = pneg %p1238
      $region86: #{tpu_custom_call.1} parent=5 // pred_check_branch
        %1241 = sbr.rel (%p1239) target = $region88
      $region87: #{tpu_custom_call.1} parent=5 // pred_region
        %s1242 = ssub.s32 %s26, 2
        // Predicated region
        $region89: #{tpu_custom_call.1} parent=87 // pred_check
          %p1243 = pneg %p254
        $region90: #{tpu_custom_call.1} parent=87 // pred_check_branch
          %1245 = sbr.rel (%p1243) target = $region92
        $region91: #{tpu_custom_call.1} parent=87 // pred_region
          %s1246 = sand.u32 %s239, 1
          %s1247 = scalar_lea.sflag [#allocation8], %s1246
          %s1248 = sand.u32 %s239, 1
          %s1249 = smul.addr %s1248, 8
          %s1250 = scalar_lea.vmem [#allocation17], %s1249
          %1251 = dma.done %s1247, 128
        $region92: #{tpu_custom_call.1} parent=87 // pred_fallthru
          _
      $region88: #{tpu_custom_call.1} parent=5 // pred_fallthru
        _
    $region6: #{tpu_custom_call.1} parent=1 // loop_footer
      %s30 = sadd.s32 1, %s26
    $region7: #{tpu_custom_call.1} parent=1 // loop_footer_branch
      %25 = sbr.rel target = $region3
    $region8: #{tpu_custom_call.1} parent=1 // loop_exit
      _
    %1252 = vsyncpa [#allocation7], 1
    %s1253 = scalar_lea.sflag [#allocation7], 1
    %1254 = vsyncpa %s1253, 1
    %1255 = vsyncpa [#allocation10], 1
    %s1256 = scalar_lea.sflag [#allocation10], 1
    %1257 = vsyncpa %s1256, 1
    %1258 = vsyncpa [#allocation13], 1
    %1259 = vsyncpa [#allocation16], 1
    %1260 = vsyncpa [#allocation8], 1
    %s1261 = scalar_lea.sflag [#allocation8], 1
    %1262 = vsyncpa %s1261, 1

</llo_original>
